<compile_context>
chip_gen: v6e
topology: v6e:2x2x1
jax: 0.10.0
libtpu: 0.0.40
codegen_flags: <defaults>
</compile_context>

<pallas_src>
from functools import partial

import jax
import jax.numpy as jnp
from jax.experimental import pallas as pl
from jax.experimental.pallas import tpu as pltpu


# ------------------------------ kernel math ------------------------------

def _conv_bn_relu(x, w_flat, b, K):
    """Conv1d(kernel=K, padding=(K-1)//2) with BN pre-folded into w/b, then ReLU.

    x:      (Bb, T, Cin) bf16 channels-last activations (per-example T axis, so
            zero padding never leaks across batch elements)
    w_flat: (K*Cin, Cout) bf16, row k*Cin + c == torch_weight[o, c, k] (BN-folded)
    b:      (1, Cout) f32 BN-folded bias
    returns (Bb, T, Cout) f32
    """
    Bb, T, Cin = x.shape
    pad = (K - 1) // 2
    z = jnp.zeros((Bb, pad, Cin), x.dtype)
    xp = jnp.concatenate([z, x, z], axis=1)                              # (Bb, T+2p, Cin)
    # im2col: one big MXU matmul with M = Bb*T and reduction depth K*Cin.
    u = jnp.concatenate([xp[:, k:k + T, :] for k in range(K)], axis=2)   # (Bb, T, K*Cin)
    u = u.reshape(Bb * T, K * Cin)
    y = jnp.dot(u, w_flat, preferred_element_type=jnp.float32) + b       # (Bb*T, Cout) f32
    return jnp.maximum(y, 0.0).reshape(Bb, T, -1)


def textprenet_kernel(K, x_ref, w1_ref, w2_ref, w3_ref, b_ref, out_ref):
    """One batch-block per grid step.

    x_ref:  (Bb, T, E) bf16 embedded phonemes
    w*_ref: (K*Cin, H) bf16 BN-folded conv weights
    b_ref:  (3, 1, H)  f32 BN-folded biases
    out_ref:(Bb, T, H) f32
    """
    h = _conv_bn_relu(x_ref[...], w1_ref[...], b_ref[0], K)
    h = _conv_bn_relu(h.astype(jnp.bfloat16), w2_ref[...], b_ref[1], K)
    h = _conv_bn_relu(h.astype(jnp.bfloat16), w3_ref[...], b_ref[2], K)
    out_ref[...] = h.astype(out_ref.dtype)


# ------------------------------ wrapper ------------------------------

def _fold_bn(w, b, gamma, beta, mean, var, eps=1e-5):
    """Fold eval-mode BatchNorm1d into the conv weight/bias.

    w: (K, Cin, Cout) with w[k, c, o] == torch_weight[o, c, k]; b: (Cout,)
    Returns (K*Cin, Cout) flattened f32 weight and (Cout,) f32 bias.
    """
    scale = gamma * jax.lax.rsqrt(var + eps)                              # (Cout,)
    w_f = (w * scale[None, None, :]).reshape(-1, w.shape[-1])
    b_f = (b - mean) * scale + beta
    return w_f, b_f


def _pick_batch_block(B, T, target_rows=256):
    """Largest divisor of B with b_blk*T <= target_rows (MXU M-dim), but keep
    at least 2 grid steps when B allows so both v7x TensorCores get work."""
    divisors = [d for d in range(1, B + 1) if B % d == 0]
    fitting = [d for d in divisors if d * T <= target_rows] or [1]
    b_blk = max(fitting)
    if B // b_blk < 2:
        smaller = [d for d in fitting if B // d >= 2]
        if smaller:
            b_blk = max(smaller)
    return b_blk


def text_prenet(ids, params):
    """Fused TextPrenet forward. ids: (B, T) int, returns (B, T, H) float32."""
    B, T = ids.shape
    V, E = params["embed"].shape
    K, _, H = params["w1"].shape

    # Fold eval-mode BN into conv weights (f32), then cast matmul operands to bf16.
    w1, b1 = _fold_bn(params["w1"], params["b1"], params["bn1_g"],
                      params["bn1_b"], params["bn1_m"], params["bn1_v"])
    w2, b2 = _fold_bn(params["w2"], params["b2"], params["bn2_g"],
                      params["bn2_b"], params["bn2_m"], params["bn2_v"])
    w3, b3 = _fold_bn(params["w3"], params["b3"], params["bn3_g"],
                      params["bn3_b"], params["bn3_m"], params["bn3_v"])
    w1 = w1.astype(jnp.bfloat16)
    w2 = w2.astype(jnp.bfloat16)
    w3 = w3.astype(jnp.bfloat16)
    biases = jnp.stack([b1, b2, b3])[:, None, :].astype(jnp.float32)      # (3, 1, H)

    # Exact nn.Embedding lookup (O(B*T*E) gather, replaces the one-hot matmul).
    x = jnp.take(params["embed"], ids.astype(jnp.int32), axis=0)          # (B, T, E)
    x = x.astype(jnp.bfloat16)

    b_blk = _pick_batch_block(B, T)
    grid = (B // b_blk,)

    grid_spec = pltpu.PrefetchScalarGridSpec(
        num_scalar_prefetch=0,
        grid=grid,
        in_specs=[
            pl.BlockSpec((b_blk, T, E), lambda i: (i, 0, 0)),             # embedded x
            pl.BlockSpec((K * E, H), lambda i: (0, 0)),                   # conv1 (folded)
            pl.BlockSpec((K * H, H), lambda i: (0, 0)),                   # conv2 (folded)
            pl.BlockSpec((K * H, H), lambda i: (0, 0)),                   # conv3 (folded)
            pl.BlockSpec((3, 1, H), lambda i: (0, 0, 0)),                 # biases
        ],
        out_specs=pl.BlockSpec((b_blk, T, H), lambda i: (i, 0, 0)),
    )

    flops = 2 * B * T * K * H * (E + 2 * H)                               # 3 convs
    bytes_accessed = (x.size * 2 + (w1.size + w2.size + w3.size) * 2
                      + biases.size * 4 + B * T * H * 4)
    cost = pl.CostEstimate(flops=flops, transcendentals=0,
                           bytes_accessed=bytes_accessed)

    return pl.pallas_call(
        partial(textprenet_kernel, K),
        out_shape=jax.ShapeDtypeStruct((B, T, H), jnp.float32),
        grid_spec=grid_spec,
        compiler_params=pltpu.CompilerParams(
            dimension_semantics=("parallel",),                            # megacore / v7x
            vmem_limit_bytes=32 * 1024 * 1024),
        cost_estimate=cost,
    )(x, w1, w2, w3, biases)


# --------------------------- pure-JAX reference ---------------------------
# Independent f32 path: jnp.take embedding + lax.conv_general_dilated + explicit
# eval-mode BatchNorm (validates conv layout, BN folding and the bf16 casts).

def text_prenet_ref(ids, params, eps=1e-5):
    x = params["embed"][ids]                       # (B, T, E)
    x = jnp.transpose(x, (0, 2, 1))                # (B, E, T)  -- like PyTorch
    for i in (1, 2, 3):
        w = params[f"w{i}"]                        # (K, Cin, Cout)
        pad = (w.shape[0] - 1) // 2
        w_oih = jnp.transpose(w, (2, 1, 0))        # (Cout, Cin, K)
        x = jax.lax.conv_general_dilated(
            x, w_oih, window_strides=(1,), padding=[(pad, pad)],
            dimension_numbers=("NCH", "OIH", "NCH"))
        x = x + params[f"b{i}"][None, :, None]
        g = params[f"bn{i}_g"][None, :, None]
        be = params[f"bn{i}_b"][None, :, None]
        m = params[f"bn{i}_m"][None, :, None]
        v = params[f"bn{i}_v"][None, :, None]
        x = (x - m) * jax.lax.rsqrt(v + eps) * g + be
        x = jnp.maximum(x, 0.0)
    return jnp.transpose(x, (0, 2, 1))             # (B, T, H)


# --------------------------------- main ---------------------------------

if __name__ == "__main__":
    B, T = 16, 16                 # batch, sequence length (phoneme IDs)
    V, E, H, K = 40, 64, 128, 5   # vocab, embedding size, num_hidden, conv kernel

    key = jax.random.PRNGKey(0)
    keys = iter(jax.random.split(key, 32))

    ids = jax.random.randint(next(keys), (B, T), 0, V)
    ids = ids.at[:, -2:].set(0)                    # a few padding tokens

    embed = 0.3 * jax.random.normal(next(keys), (V, E), jnp.float32)
    embed = embed.at[0].set(0.0)                   # padding_idx=0 -> zero row

    params = {"embed": embed}
    for i, cin in zip((1, 2, 3), (E, H, H)):
        params[f"w{i}"] = 0.05 * jax.random.normal(next(keys), (K, cin, H), jnp.float32)
        params[f"b{i}"] = 0.05 * jax.random.normal(next(keys), (H,), jnp.float32)
        params[f"bn{i}_g"] = 1.0 + 0.1 * jax.random.normal(next(keys), (H,), jnp.float32)
        params[f"bn{i}_b"] = 0.1 * jax.random.normal(next(keys), (H,), jnp.float32)
        params[f"bn{i}_m"] = 0.1 * jax.random.normal(next(keys), (H,), jnp.float32)
        params[f"bn{i}_v"] = jax.random.uniform(next(keys), (H,), jnp.float32, 0.5, 1.5)

    out = text_prenet(ids, params)
    out = jax.block_until_ready(out)

    ref = text_prenet_ref(ids, params)
    assert out.shape == (B, T, H)
    assert bool(jnp.allclose(out, ref, rtol=2e-2, atol=2e-2)), "mismatch vs JAX reference"

    print("KERNEL_OK")
</pallas_src>

<mosaic_0001>
module attributes {stable_mosaic.version = 11 : i64} {
  func.func @textprenet_kernel(%arg0: i32, %arg1: memref<8x16x64xbf16, #tpu.memory_space<vmem>>, %arg2: memref<320x128xbf16, #tpu.memory_space<vmem>>, %arg3: memref<640x128xbf16, #tpu.memory_space<vmem>>, %arg4: memref<640x128xbf16, #tpu.memory_space<vmem>>, %arg5: memref<3x1x128xf32, #tpu.memory_space<vmem>>, %arg6: memref<8x16x128xf32, #tpu.memory_space<vmem>>) attributes {dimension_semantics = [#tpu.dimension_semantics<parallel>], iteration_bounds = array<i64: 2>, scalar_prefetch = 0 : i64, scratch_operands = 0 : i64, tpu.core_type = #tpu.core_type<tc>, window_params = [{transform_indices = @transform_0, window_bounds = array<i64: 8, 16, 64>}, {pipeline_mode = #tpu.pipeline_mode<synchronous>, transform_indices = @transform_1, window_bounds = array<i64: 320, 128>}, {pipeline_mode = #tpu.pipeline_mode<synchronous>, transform_indices = @transform_2, window_bounds = array<i64: 640, 128>}, {pipeline_mode = #tpu.pipeline_mode<synchronous>, transform_indices = @transform_3, window_bounds = array<i64: 640, 128>}, {pipeline_mode = #tpu.pipeline_mode<synchronous>, transform_indices = @transform_4, window_bounds = array<i64: 3, 1, 128>}, {transform_indices = @transform_5, window_bounds = array<i64: 8, 16, 128>}]} {
    %c0 = arith.constant 0 : index
    %c0_0 = arith.constant 0 : index
    %c0_1 = arith.constant 0 : index
    %0 = vector.load %arg1[%c0, %c0_0, %c0_1] : memref<8x16x64xbf16, #tpu.memory_space<vmem>>, vector<8x16x64xbf16>
    %c0_2 = arith.constant 0 : index
    %c0_3 = arith.constant 0 : index
    %1 = vector.load %arg2[%c0_2, %c0_3] : memref<320x128xbf16, #tpu.memory_space<vmem>>, vector<320x128xbf16>
    %c0_4 = arith.constant 0 : index
    %c0_5 = arith.constant 0 : index
    %c0_6 = arith.constant 0 : index
    %2 = vector.load %arg5[%c0_4, %c0_5, %c0_6] : memref<3x1x128xf32, #tpu.memory_space<vmem>>, vector<1x1x128xf32>
    %3 = vector.shape_cast %2 : vector<1x1x128xf32> to vector<1x128xf32>
    %cst = arith.constant 0.000000e+00 : bf16
    %4 = vector.broadcast %cst : bf16 to vector<8x2x64xbf16>
    %5 = tpu.concatenate %4, %0, %4 in 1 : vector<8x2x64xbf16>, vector<8x16x64xbf16>, vector<8x2x64xbf16> -> vector<8x20x64xbf16>
    %6 = vector.extract_strided_slice %5 {offsets = [0, 0, 0], sizes = [8, 16, 64], strides = [1, 1, 1]} : vector<8x20x64xbf16> to vector<8x16x64xbf16>
    %7 = vector.extract_strided_slice %5 {offsets = [0, 1, 0], sizes = [8, 16, 64], strides = [1, 1, 1]} : vector<8x20x64xbf16> to vector<8x16x64xbf16>
    %8 = vector.extract_strided_slice %5 {offsets = [0, 2, 0], sizes = [8, 16, 64], strides = [1, 1, 1]} : vector<8x20x64xbf16> to vector<8x16x64xbf16>
    %9 = vector.extract_strided_slice %5 {offsets = [0, 3, 0], sizes = [8, 16, 64], strides = [1, 1, 1]} : vector<8x20x64xbf16> to vector<8x16x64xbf16>
    %10 = vector.extract_strided_slice %5 {offsets = [0, 4, 0], sizes = [8, 16, 64], strides = [1, 1, 1]} : vector<8x20x64xbf16> to vector<8x16x64xbf16>
    %11 = tpu.concatenate %6, %7, %8, %9, %10 in 2 : vector<8x16x64xbf16>, vector<8x16x64xbf16>, vector<8x16x64xbf16>, vector<8x16x64xbf16>, vector<8x16x64xbf16> -> vector<8x16x320xbf16>
    %12 = vector.shape_cast %11 : vector<8x16x320xbf16> to vector<128x320xbf16>
    %cst_7 = arith.constant dense<0.000000e+00> : vector<128x128xf32>
    %13 = tpu.matmul %12, %1, %cst_7 {dimension_numbers = #tpu.dot_dimension_numbers<[1], [0], [0], [1], [0, 0, 1, 1], [], []>} : vector<128x320xbf16>, vector<320x128xbf16>, vector<128x128xf32> -> vector<128x128xf32>
    %14 = vector.broadcast %3 : vector<1x128xf32> to vector<128x128xf32>
    %15 = arith.addf %13, %14 : vector<128x128xf32>
    %cst_8 = arith.constant 0.000000e+00 : f32
    %16 = vector.broadcast %cst_8 : f32 to vector<128x128xf32>
    %17 = arith.maximumf %15, %16 : vector<128x128xf32>
    %18 = vector.shape_cast %17 : vector<128x128xf32> to vector<8x16x128xf32>
    %19 = arith.truncf %18 : vector<8x16x128xf32> to vector<8x16x128xbf16>
    %c0_9 = arith.constant 0 : index
    %c0_10 = arith.constant 0 : index
    %20 = vector.load %arg3[%c0_9, %c0_10] : memref<640x128xbf16, #tpu.memory_space<vmem>>, vector<640x128xbf16>
    %c1 = arith.constant 1 : index
    %c0_11 = arith.constant 0 : index
    %c0_12 = arith.constant 0 : index
    %21 = vector.load %arg5[%c1, %c0_11, %c0_12] : memref<3x1x128xf32, #tpu.memory_space<vmem>>, vector<1x1x128xf32>
    %22 = vector.shape_cast %21 : vector<1x1x128xf32> to vector<1x128xf32>
    %cst_13 = arith.constant 0.000000e+00 : bf16
    %23 = vector.broadcast %cst_13 : bf16 to vector<8x2x128xbf16>
    %24 = tpu.concatenate %23, %19, %23 in 1 : vector<8x2x128xbf16>, vector<8x16x128xbf16>, vector<8x2x128xbf16> -> vector<8x20x128xbf16>
    %25 = vector.extract_strided_slice %24 {offsets = [0, 0, 0], sizes = [8, 16, 128], strides = [1, 1, 1]} : vector<8x20x128xbf16> to vector<8x16x128xbf16>
    %26 = vector.extract_strided_slice %24 {offsets = [0, 1, 0], sizes = [8, 16, 128], strides = [1, 1, 1]} : vector<8x20x128xbf16> to vector<8x16x128xbf16>
    %27 = vector.extract_strided_slice %24 {offsets = [0, 2, 0], sizes = [8, 16, 128], strides = [1, 1, 1]} : vector<8x20x128xbf16> to vector<8x16x128xbf16>
    %28 = vector.extract_strided_slice %24 {offsets = [0, 3, 0], sizes = [8, 16, 128], strides = [1, 1, 1]} : vector<8x20x128xbf16> to vector<8x16x128xbf16>
    %29 = vector.extract_strided_slice %24 {offsets = [0, 4, 0], sizes = [8, 16, 128], strides = [1, 1, 1]} : vector<8x20x128xbf16> to vector<8x16x128xbf16>
    %30 = tpu.concatenate %25, %26, %27, %28, %29 in 2 : vector<8x16x128xbf16>, vector<8x16x128xbf16>, vector<8x16x128xbf16>, vector<8x16x128xbf16>, vector<8x16x128xbf16> -> vector<8x16x640xbf16>
    %31 = vector.shape_cast %30 : vector<8x16x640xbf16> to vector<128x640xbf16>
    %cst_14 = arith.constant dense<0.000000e+00> : vector<128x128xf32>
    %32 = tpu.matmul %31, %20, %cst_14 {dimension_numbers = #tpu.dot_dimension_numbers<[1], [0], [0], [1], [0, 0, 1, 1], [], []>} : vector<128x640xbf16>, vector<640x128xbf16>, vector<128x128xf32> -> vector<128x128xf32>
    %33 = vector.broadcast %22 : vector<1x128xf32> to vector<128x128xf32>
    %34 = arith.addf %32, %33 : vector<128x128xf32>
    %cst_15 = arith.constant 0.000000e+00 : f32
    %35 = vector.broadcast %cst_15 : f32 to vector<128x128xf32>
    %36 = arith.maximumf %34, %35 : vector<128x128xf32>
    %37 = vector.shape_cast %36 : vector<128x128xf32> to vector<8x16x128xf32>
    %38 = arith.truncf %37 : vector<8x16x128xf32> to vector<8x16x128xbf16>
    %c0_16 = arith.constant 0 : index
    %c0_17 = arith.constant 0 : index
    %39 = vector.load %arg4[%c0_16, %c0_17] : memref<640x128xbf16, #tpu.memory_space<vmem>>, vector<640x128xbf16>
    %c2 = arith.constant 2 : index
    %c0_18 = arith.constant 0 : index
    %c0_19 = arith.constant 0 : index
    %40 = vector.load %arg5[%c2, %c0_18, %c0_19] : memref<3x1x128xf32, #tpu.memory_space<vmem>>, vector<1x1x128xf32>
    %41 = vector.shape_cast %40 : vector<1x1x128xf32> to vector<1x128xf32>
    %cst_20 = arith.constant 0.000000e+00 : bf16
    %42 = vector.broadcast %cst_20 : bf16 to vector<8x2x128xbf16>
    %43 = tpu.concatenate %42, %38, %42 in 1 : vector<8x2x128xbf16>, vector<8x16x128xbf16>, vector<8x2x128xbf16> -> vector<8x20x128xbf16>
    %44 = vector.extract_strided_slice %43 {offsets = [0, 0, 0], sizes = [8, 16, 128], strides = [1, 1, 1]} : vector<8x20x128xbf16> to vector<8x16x128xbf16>
    %45 = vector.extract_strided_slice %43 {offsets = [0, 1, 0], sizes = [8, 16, 128], strides = [1, 1, 1]} : vector<8x20x128xbf16> to vector<8x16x128xbf16>
    %46 = vector.extract_strided_slice %43 {offsets = [0, 2, 0], sizes = [8, 16, 128], strides = [1, 1, 1]} : vector<8x20x128xbf16> to vector<8x16x128xbf16>
    %47 = vector.extract_strided_slice %43 {offsets = [0, 3, 0], sizes = [8, 16, 128], strides = [1, 1, 1]} : vector<8x20x128xbf16> to vector<8x16x128xbf16>
    %48 = vector.extract_strided_slice %43 {offsets = [0, 4, 0], sizes = [8, 16, 128], strides = [1, 1, 1]} : vector<8x20x128xbf16> to vector<8x16x128xbf16>
    %49 = tpu.concatenate %44, %45, %46, %47, %48 in 2 : vector<8x16x128xbf16>, vector<8x16x128xbf16>, vector<8x16x128xbf16>, vector<8x16x128xbf16>, vector<8x16x128xbf16> -> vector<8x16x640xbf16>
    %50 = vector.shape_cast %49 : vector<8x16x640xbf16> to vector<128x640xbf16>
    %cst_21 = arith.constant dense<0.000000e+00> : vector<128x128xf32>
    %51 = tpu.matmul %50, %39, %cst_21 {dimension_numbers = #tpu.dot_dimension_numbers<[1], [0], [0], [1], [0, 0, 1, 1], [], []>} : vector<128x640xbf16>, vector<640x128xbf16>, vector<128x128xf32> -> vector<128x128xf32>
    %52 = vector.broadcast %41 : vector<1x128xf32> to vector<128x128xf32>
    %53 = arith.addf %51, %52 : vector<128x128xf32>
    %cst_22 = arith.constant 0.000000e+00 : f32
    %54 = vector.broadcast %cst_22 : f32 to vector<128x128xf32>
    %55 = arith.maximumf %53, %54 : vector<128x128xf32>
    %56 = vector.shape_cast %55 : vector<128x128xf32> to vector<8x16x128xf32>
    %c0_23 = arith.constant 0 : index
    %c0_24 = arith.constant 0 : index
    %c0_25 = arith.constant 0 : index
    %57 = vector.load %arg6[%c0_23, %c0_24, %c0_25] : memref<8x16x128xf32, #tpu.memory_space<vmem>>, vector<8x16x128xf32>
    tpu.vector_store %arg6[%c0_23, %c0_24, %c0_25], %56 {strides = array<i32>} : memref<8x16x128xf32, #tpu.memory_space<vmem>>, vector<8x16x128xf32>,
    return
  }
  func.func @transform_0(%arg0: i32) -> (i32, i32, i32) {
    %c0_i32 = arith.constant 0 : i32
    %c0_i32_0 = arith.constant 0 : i32
    %c0_i32_1 = arith.constant 0 : i32
    return %arg0, %c0_i32, %c0_i32_0 : i32, i32, i32
  }
  func.func @transform_1(%arg0: i32) -> (i32, i32) {
    %c0_i32 = arith.constant 0 : i32
    %c0_i32_0 = arith.constant 0 : i32
    %c0_i32_1 = arith.constant 0 : i32
    return %c0_i32, %c0_i32_0 : i32, i32
  }
  func.func @transform_2(%arg0: i32) -> (i32, i32) {
    %c0_i32 = arith.constant 0 : i32
    %c0_i32_0 = arith.constant 0 : i32
    %c0_i32_1 = arith.constant 0 : i32
    return %c0_i32, %c0_i32_0 : i32, i32
  }
  func.func @transform_3(%arg0: i32) -> (i32, i32) {
    %c0_i32 = arith.constant 0 : i32
    %c0_i32_0 = arith.constant 0 : i32
    %c0_i32_1 = arith.constant 0 : i32
    return %c0_i32, %c0_i32_0 : i32, i32
  }
  func.func @transform_4(%arg0: i32) -> (i32, i32, i32) {
    %c0_i32 = arith.constant 0 : i32
    %c0_i32_0 = arith.constant 0 : i32
    %c0_i32_1 = arith.constant 0 : i32
    %c0_i32_2 = arith.constant 0 : i32
    return %c0_i32, %c0_i32_0, %c0_i32_1 : i32, i32, i32
  }
  func.func @transform_5(%arg0: i32) -> (i32, i32, i32) {
    %c0_i32 = arith.constant 0 : i32
    %c0_i32_0 = arith.constant 0 : i32
    %c0_i32_1 = arith.constant 0 : i32
    return %arg0, %c0_i32, %c0_i32_0 : i32, i32, i32
  }
}

</mosaic_0001>

<llo_original>
// kernel: tpu_custom_call.1
$region0: #{tpu_custom_call.1}
  #allocation0 [shape = 'u32[]', space=smem, size = 0x4, offset = 0x4, fixed_abs, tag = 'smem constant byte address 0x4 - core index']
  #allocation1 [shape = 'u32[144,128]{1,0:T(1,128)}', space=vmem, size = 0x12000, scoped, tag = 'internal scratch']
  %s0 = inlined_call_operand.hbm [shape: bf16[16,16,64], index: 0, kind: input, shape index: {}]
  %s1 = inlined_call_operand.hbm [shape: bf16[320,128], index: 1, kind: input, shape index: {}]
  %s2 = inlined_call_operand.hbm [shape: bf16[640,128], index: 2, kind: input, shape index: {}]
  %s3 = inlined_call_operand.hbm [shape: bf16[640,128], index: 3, kind: input, shape index: {}]
  %s4 = inlined_call_operand.vmem [shape: f32[3,1,128], index: 4, kind: input, shape index: {}]
  %s5 = inlined_call_operand.hbm [shape: f32[16,16,128], index: 5, kind: output, shape index: {}]
  %s6 = sld [smem:[#allocation0]]
  $region69: #{tpu_custom_call.1} parent=0
    _
  %s8 = ssub.s32 1, %s6
  %s9 = scalar_select 0, %s8, %s6
  $region1: #{tpu_custom_call.1} parent=0
    #allocation2 [shape = 'u8[65536]{0}', space=vmem, size = 0x10000, scoped, tag = 'input window, operand 0']
    #allocation3 [shape = 's32[2]{0}', space=sflag, size = 0x8, scoped, tag = 'scoped memory for tpu_custom_call.1']
    #allocation4 [shape = 's32[2]{0}', space=sflag, size = 0x8, scoped, tag = 'scoped memory for tpu_custom_call.1']
    #allocation5 [shape = 'u8[81920]{0}', space=vmem, size = 0x14000, scoped, tag = 'input window, operand 1, single buffered']
    #allocation6 [shape = 's32[1]{0}', space=sflag, size = 0x4, scoped, tag = 'scoped memory for tpu_custom_call.1']
    #allocation7 [shape = 'u8[163840]{0}', space=vmem, size = 0x28000, scoped, tag = 'input window, operand 2, single buffered']
    #allocation8 [shape = 'u8[163840]{0}', space=vmem, size = 0x28000, scoped, tag = 'input window, operand 3, single buffered']
    #allocation9 [shape = 's32[1]{0}', space=sflag, size = 0x4, scoped, tag = 'scoped memory for tpu_custom_call.1']
    #allocation10 [shape = 'u8[131072]{0}', space=vmem, size = 0x20000, scoped, tag = 'output window, operand 0']
    %10 = vsyncpa [#allocation3], 0
    %s11 = scalar_lea.sflag [#allocation3], 1
    %12 = vsyncpa %s11, 0
    %13 = vsyncpa [#allocation6], 0
    %14 = vsyncpa [#allocation9], 0
    %15 = vsyncpa [#allocation4], 0
    %s16 = scalar_lea.sflag [#allocation4], 1
    %17 = vsyncpa %s16, 0
    loop: start=0, step=1, limit=4
    $region2: #{tpu_custom_call.1} parent=1 // loop_pre_header
      _
    $region3: #{tpu_custom_call.1} parent=1 // loop_header
      %s19 = sphi 0, %s23
      %p20 = scmp.ge.s32.totalorder %s19, 4
      %s29 = sphi 0, %s31
      %s32 = sphi 0, %s29
      %s33 = sphi 0, %s32
      %s49 = sphi 0, %s33
      %s53 = sphi 0, %s53
      %s55 = sphi 0, %s53
      %s56 = sphi 0, %s55
      %s70 = sphi 0, %s56
      %s74 = sphi 0, %s74
      %s76 = sphi 0, %s74
      %s77 = sphi 0, %s76
      %s91 = sphi 0, %s77
      %s95 = sphi 0, %s95
      %s97 = sphi 0, %s95
      %s98 = sphi 0, %s97
      %s112 = sphi 0, %s98
      %s116 = sphi 0, %s116
      %s118 = sphi 0, %s116
      %s119 = sphi 0, %s118
      %s133 = sphi 0, %s119
      %s139 = sphi 0, %s141
      %s142 = sphi 0, %s139
      %s143 = sphi 0, %s142
      %s159 = sphi 0, %s143
    $region4: #{tpu_custom_call.1} parent=1 // loop_header_branch
      %22 = sbr.rel (%p20) target = $region8
    $region5: #{tpu_custom_call.1} parent=1 // loop_body
      %s24 = ssub.s32 %s19, 1
      %s25 = ssub.s32 %s19, 2
      %s26 = sadd.s32 %s19, 1
      %s27 = ssub.s32 %s19, %s26
      %p28 = scmp.eq.s32.totalorder %s27, 0
      %s30 = sadd.s32 %s29, 1
      %s31 = scalar_select %p28, %s29, %s30
      %p34 = pneg %p28
      %p35 = scmp.eq.s32.totalorder %s19, 1
      %p36 = por %p34, %p35
      %p37 = scmp.ne.s32.totalorder %s29, %s32
      %p38 = scmp.eq.s32.totalorder %s19, 0
      %p39 = por %p37, %p38
      %p40 = scmp.ne.s32.totalorder %s29, %s32
      %p41 = scmp.eq.s32.totalorder %s24, 1
      %p42 = por %p40, %p41
      %p43 = scmp.ne.s32.totalorder %s32, %s33
      %p44 = scmp.eq.s32.totalorder %s24, 0
      %p45 = por %p43, %p44
      %p46 = scmp.ne.s32.totalorder %s32, %s33
      %p47 = scmp.eq.s32.totalorder %s25, 1
      %p48 = por %p46, %p47
      %p50 = scmp.ne.s32.totalorder %s33, %s49
      %p51 = scmp.eq.s32.totalorder %s25, 0
      %p52 = por %p50, %p51
      %s54 = sadd.s32 %s53, 1
      %p57 = scmp.eq.s32.totalorder %s19, 1
      %p58 = scmp.ne.s32.totalorder %s53, %s55
      %p59 = scmp.eq.s32.totalorder %s19, 0
      %p60 = por %p58, %p59
      %p61 = scmp.ne.s32.totalorder %s53, %s55
      %p62 = scmp.eq.s32.totalorder %s24, 1
      %p63 = por %p61, %p62
      %p64 = scmp.ne.s32.totalorder %s55, %s56
      %p65 = scmp.eq.s32.totalorder %s24, 0
      %p66 = por %p64, %p65
      %p67 = scmp.ne.s32.totalorder %s55, %s56
      %p68 = scmp.eq.s32.totalorder %s25, 1
      %p69 = por %p67, %p68
      %p71 = scmp.ne.s32.totalorder %s56, %s70
      %p72 = scmp.eq.s32.totalorder %s25, 0
      %p73 = por %p71, %p72
      %s75 = sadd.s32 %s74, 1
      %p78 = scmp.eq.s32.totalorder %s19, 1
      %p79 = scmp.ne.s32.totalorder %s74, %s76
      %p80 = scmp.eq.s32.totalorder %s19, 0
      %p81 = por %p79, %p80
      %p82 = scmp.ne.s32.totalorder %s74, %s76
      %p83 = scmp.eq.s32.totalorder %s24, 1
      %p84 = por %p82, %p83
      %p85 = scmp.ne.s32.totalorder %s76, %s77
      %p86 = scmp.eq.s32.totalorder %s24, 0
      %p87 = por %p85, %p86
      %p88 = scmp.ne.s32.totalorder %s76, %s77
      %p89 = scmp.eq.s32.totalorder %s25, 1
      %p90 = por %p88, %p89
      %p92 = scmp.ne.s32.totalorder %s77, %s91
      %p93 = scmp.eq.s32.totalorder %s25, 0
      %p94 = por %p92, %p93
      %s96 = sadd.s32 %s95, 1
      %p99 = scmp.eq.s32.totalorder %s19, 1
      %p100 = scmp.ne.s32.totalorder %s95, %s97
      %p101 = scmp.eq.s32.totalorder %s19, 0
      %p102 = por %p100, %p101
      %p103 = scmp.ne.s32.totalorder %s95, %s97
      %p104 = scmp.eq.s32.totalorder %s24, 1
      %p105 = por %p103, %p104
      %p106 = scmp.ne.s32.totalorder %s97, %s98
      %p107 = scmp.eq.s32.totalorder %s24, 0
      %p108 = por %p106, %p107
      %p109 = scmp.ne.s32.totalorder %s97, %s98
      %p110 = scmp.eq.s32.totalorder %s25, 1
      %p111 = por %p109, %p110
      %p113 = scmp.ne.s32.totalorder %s98, %s112
      %p114 = scmp.eq.s32.totalorder %s25, 0
      %p115 = por %p113, %p114
      %s117 = sadd.s32 %s116, 1
      %p120 = scmp.eq.s32.totalorder %s19, 1
      %p121 = scmp.ne.s32.totalorder %s116, %s118
      %p122 = scmp.eq.s32.totalorder %s19, 0
      %p123 = por %p121, %p122
      %p124 = scmp.ne.s32.totalorder %s116, %s118
      %p125 = scmp.eq.s32.totalorder %s24, 1
      %p126 = por %p124, %p125
      %p127 = scmp.ne.s32.totalorder %s118, %s119
      %p128 = scmp.eq.s32.totalorder %s24, 0
      %p129 = por %p127, %p128
      %p130 = scmp.ne.s32.totalorder %s118, %s119
      %p131 = scmp.eq.s32.totalorder %s25, 1
      %p132 = por %p130, %p131
      %p134 = scmp.ne.s32.totalorder %s119, %s133
      %p135 = scmp.eq.s32.totalorder %s25, 0
      %p136 = por %p134, %p135
      %s137 = ssub.s32 %s19, %s26
      %p138 = scmp.eq.s32.totalorder %s137, 0
      %s140 = sadd.s32 %s139, 1
      %s141 = scalar_select %p138, %s139, %s140
      %p144 = pneg %p138
      %p145 = scmp.eq.s32.totalorder %s19, 1
      %p146 = por %p144, %p145
      %p147 = scmp.ne.s32.totalorder %s139, %s142
      %p148 = scmp.eq.s32.totalorder %s19, 0
      %p149 = por %p147, %p148
      %p150 = scmp.ne.s32.totalorder %s139, %s142
      %p151 = scmp.eq.s32.totalorder %s24, 1
      %p152 = por %p150, %p151
      %p153 = scmp.ne.s32.totalorder %s142, %s143
      %p154 = scmp.eq.s32.totalorder %s24, 0
      %p155 = por %p153, %p154
      %p156 = scmp.ne.s32.totalorder %s142, %s143
      %p157 = scmp.eq.s32.totalorder %s25, 1
      %p158 = por %p156, %p157
      %p160 = scmp.ne.s32.totalorder %s143, %s159
      %p161 = scmp.eq.s32.totalorder %s25, 0
      %p162 = por %p160, %p161
      %p163 = scmp.le.s32.totalorder 1, %s19
      %p164 = scmp.lt.s32.totalorder %s19, 3
      %p165 = pnand %p163, %p164
      %p166 = pneg %p165
      // Predicated region
      $region9: #{tpu_custom_call.1} parent=5 // pred_check
        _
      $region10: #{tpu_custom_call.1} parent=5 // pred_check_branch
        %168 = sbr.rel (%p165) target = $region12
      $region11: #{tpu_custom_call.1} parent=5 // pred_region
        %s169 = ssub.s32 %s19, 1
        // Predicated region
        $region13: #{tpu_custom_call.1} parent=11 // pred_check
          %p170 = pneg %p66
        $region14: #{tpu_custom_call.1} parent=11 // pred_check_branch
          %172 = sbr.rel (%p170) target = $region16
        $region15: #{tpu_custom_call.1} parent=11 // pred_region
          %s174 = ssub.s32 2560, 2560
          %175 = vsyncadd [#allocation6], %s174
          %s176 = sshll.u32 [#allocation5], 4
          %s177 = int_to_ptr.vmem [resolvable:$true] %s176
          %182 = dma.hbm_to_vmem [thread:$0]  %s1, 2560, %s177, [#allocation6], 64, 64, 4
        $region16: #{tpu_custom_call.1} parent=11 // pred_fallthru
          _
        // Predicated region
        $region17: #{tpu_custom_call.1} parent=11 // pred_check
          %p183 = pneg %p87
        $region18: #{tpu_custom_call.1} parent=11 // pred_check_branch
          %185 = sbr.rel (%p183) target = $region20
        $region19: #{tpu_custom_call.1} parent=11 // pred_region
          %s187 = ssub.s32 5120, 5120
          %188 = vsyncadd [#allocation6], %s187
          %s189 = sshll.u32 [#allocation7], 4
          %s190 = int_to_ptr.vmem [resolvable:$true] %s189
          %195 = dma.hbm_to_vmem [thread:$0]  %s2, 5120, %s190, [#allocation6], 64, 64, 4
        $region20: #{tpu_custom_call.1} parent=11 // pred_fallthru
          _
        // Predicated region
        $region21: #{tpu_custom_call.1} parent=11 // pred_check
          %p196 = pneg %p108
        $region22: #{tpu_custom_call.1} parent=11 // pred_check_branch
          %198 = sbr.rel (%p196) target = $region24
        $region23: #{tpu_custom_call.1} parent=11 // pred_region
          %s200 = ssub.s32 5120, 5120
          %201 = vsyncadd [#allocation9], %s200
          %s202 = sshll.u32 [#allocation8], 4
          %s203 = int_to_ptr.vmem [resolvable:$true] %s202
          %208 = dma.hbm_to_vmem [thread:$0]  %s3, 5120, %s203, [#allocation9], 64, 64, 4
        $region24: #{tpu_custom_call.1} parent=11 // pred_fallthru
          _
        // Predicated region
        $region25: #{tpu_custom_call.1} parent=11 // pred_check
          %p209 = pneg %p129
        $region26: #{tpu_custom_call.1} parent=11 // pred_check_branch
          %211 = sbr.rel (%p209) target = $region28
        $region27: #{tpu_custom_call.1} parent=11 // pred_region
          _
        $region28: #{tpu_custom_call.1} parent=11 // pred_fallthru
          _
      $region12: #{tpu_custom_call.1} parent=5 // pred_fallthru
        _
      %p212 = scmp.lt.s32.totalorder %s19, 2
      // Predicated region
      $region29: #{tpu_custom_call.1} parent=5 // pred_check
        %p213 = pneg %p212
      $region30: #{tpu_custom_call.1} parent=5 // pred_check_branch
        %215 = sbr.rel (%p213) target = $region32
      $region31: #{tpu_custom_call.1} parent=5 // pred_region
        // Predicated region
        $region33: #{tpu_custom_call.1} parent=31 // pred_check
          %p216 = pneg %p39
        $region34: #{tpu_custom_call.1} parent=31 // pred_check_branch
          %218 = sbr.rel (%p216) target = $region36
        $region35: #{tpu_custom_call.1} parent=31 // pred_region
          %s219 = sand.u32 %s29, 1
          %s220 = scalar_lea.sflag [#allocation3], %s219
          %s221 = sand.u32 %s29, 1
          %s222 = smul.addr %s221, 64
          %s223 = scalar_lea.vmem [#allocation2], %s222
          %s224 = smul.u32 8, %s19
          %s226 = ssub.s32 1024, 1024
          %227 = vsyncadd %s220, %s226
          %s228 = smul.addr %s224, 2
          %s229 = smul.addr %s228, 64
          %s230 = scalar_lea.hbm %s0, %s229
          %s231 = sshll.u32 %s223, 4
          %s232 = int_to_ptr.vmem [resolvable:$true] %s231
          %237 = dma.hbm_to_vmem [thread:$0]  %s230, 1024, %s232, %s220, 64, 64, 4
        $region36: #{tpu_custom_call.1} parent=31 // pred_fallthru
          _
      $region32: #{tpu_custom_call.1} parent=5 // pred_fallthru
        _
      %p238 = scmp.le.s32.totalorder 1, %s19
      %p239 = scmp.lt.s32.totalorder %s19, 3
      %p240 = pnand %p238, %p239
      %p241 = pneg %p240
      // Predicated region
      $region37: #{tpu_custom_call.1} parent=5 // pred_check
        _
      $region38: #{tpu_custom_call.1} parent=5 // pred_check_branch
        %243 = sbr.rel (%p240) target = $region40
      $region39: #{tpu_custom_call.1} parent=5 // pred_region
        %s244 = ssub.s32 %s19, 1
        %s245 = sand.u32 %s32, 1
        %s246 = scalar_lea.sflag [#allocation3], %s245
        %s247 = sand.u32 %s32, 1
        %s248 = smul.addr %s247, 64
        %s249 = scalar_lea.vmem [#allocation2], %s248
        // Predicated region
        $region41: #{tpu_custom_call.1} parent=39 // pred_check
          %p250 = pneg %p45
        $region42: #{tpu_custom_call.1} parent=39 // pred_check_branch
          %252 = sbr.rel (%p250) target = $region44
        $region43: #{tpu_custom_call.1} parent=39 // pred_region
          %253 = dma.done %s246, 1024
        $region44: #{tpu_custom_call.1} parent=39 // pred_fallthru
          _
        // Predicated region
        $region45: #{tpu_custom_call.1} parent=39 // pred_check
          %p254 = pneg %p66
        $region46: #{tpu_custom_call.1} parent=39 // pred_check_branch
          %256 = sbr.rel (%p254) target = $region48
        $region47: #{tpu_custom_call.1} parent=39 // pred_region
          %257 = dma.done [#allocation6], 2560
        $region48: #{tpu_custom_call.1} parent=39 // pred_fallthru
          _
        // Predicated region
        $region49: #{tpu_custom_call.1} parent=39 // pred_check
          %p258 = pneg %p87
        $region50: #{tpu_custom_call.1} parent=39 // pred_check_branch
          %260 = sbr.rel (%p258) target = $region52
        $region51: #{tpu_custom_call.1} parent=39 // pred_region
          %261 = dma.done [#allocation6], 5120
        $region52: #{tpu_custom_call.1} parent=39 // pred_fallthru
          _
        // Predicated region
        $region53: #{tpu_custom_call.1} parent=39 // pred_check
          %p262 = pneg %p108
        $region54: #{tpu_custom_call.1} parent=39 // pred_check_branch
          %264 = sbr.rel (%p262) target = $region56
        $region55: #{tpu_custom_call.1} parent=39 // pred_region
          %265 = dma.done [#allocation9], 5120
        $region56: #{tpu_custom_call.1} parent=39 // pred_fallthru
          _
        %s266 = sand.u32 %s32, 1
        %s267 = scalar_lea.sflag [#allocation3], %s266
        %s268 = sand.u32 %s32, 1
        %s269 = smul.addr %s268, 64
        %s270 = scalar_lea.vmem [#allocation2], %s269
        %p271 = pneg %p45
        %p272 = pneg %p42
        %p273 = pneg %p66
        %p274 = pneg %p63
        %p275 = pneg %p87
        %p276 = pneg %p84
        %p277 = pneg %p108
        %p278 = pneg %p105
        %p279 = pneg %p129
        %p280 = pneg %p126
        %p281 = pneg %p155
        %p282 = pneg %p152
        %s283 = sand.u32 %s142, 1
        %s284 = scalar_lea.sflag [#allocation4], %s283
        %s285 = sand.u32 %s142, 1
        %s286 = smul.addr %s285, 128
        %s287 = scalar_lea.vmem [#allocation10], %s286
        %s288 = smul.u32 8, %s24
        %s289 = smul.u32 8, %s24
        %v291 = vld [vmem:[%s249] sm:$0xf]
        %v292 = vld [vmem:[%s249 + $0x4] sm:$0xf]
        %v293 = vld [vmem:[%s249 + $0x8] sm:$0xf]
        %v294 = vld [vmem:[%s249 + $0xc] sm:$0xf]
        %v295 = vld [vmem:[%s249 + $0x10] sm:$0xf]
        %v296 = vld [vmem:[%s249 + $0x14] sm:$0xf]
        %v297 = vld [vmem:[%s249 + $0x18] sm:$0xf]
        %v298 = vld [vmem:[%s249 + $0x1c] sm:$0xf]
        %v299 = vld [vmem:[%s249 + $0x20] sm:$0xf]
        %v300 = vld [vmem:[%s249 + $0x24] sm:$0xf]
        %v301 = vld [vmem:[%s249 + $0x28] sm:$0xf]
        %v302 = vld [vmem:[%s249 + $0x2c] sm:$0xf]
        %v303 = vld [vmem:[%s249 + $0x30] sm:$0xf]
        %v304 = vld [vmem:[%s249 + $0x34] sm:$0xf]
        %v305 = vld [vmem:[%s249 + $0x38] sm:$0xf]
        %v306 = vld [vmem:[%s249 + $0x3c] sm:$0xf]
        %v307 = vld [vmem:[#allocation5] sm:$0xf]
        %v308 = vld [vmem:[#allocation5 + $0x4] sm:$0xf]
        %v309 = vld [vmem:[#allocation5 + $0x8] sm:$0xf]
        %v310 = vld [vmem:[#allocation5 + $0xc] sm:$0xf]
        %v311 = vld [vmem:[#allocation5 + $0x10] sm:$0xf]
        %v312 = vld [vmem:[#allocation5 + $0x14] sm:$0xf]
        %v313 = vld [vmem:[#allocation5 + $0x18] sm:$0xf]
        %v314 = vld [vmem:[#allocation5 + $0x1c] sm:$0xf]
        %v315 = vld [vmem:[#allocation5 + $0x20] sm:$0xf]
        %v316 = vld [vmem:[#allocation5 + $0x24] sm:$0xf]
        %v317 = vld [vmem:[#allocation5 + $0x28] sm:$0xf]
        %v318 = vld [vmem:[#allocation5 + $0x2c] sm:$0xf]
        %v319 = vld [vmem:[#allocation5 + $0x30] sm:$0xf]
        %v320 = vld [vmem:[#allocation5 + $0x34] sm:$0xf]
        %v321 = vld [vmem:[#allocation5 + $0x38] sm:$0xf]
        %v322 = vld [vmem:[#allocation5 + $0x3c] sm:$0xf]
        %v323 = vld [vmem:[#allocation5 + $0x40] sm:$0xf]
        %v324 = vld [vmem:[#allocation5 + $0x44] sm:$0xf]
        %v325 = vld [vmem:[#allocation5 + $0x48] sm:$0xf]
        %v326 = vld [vmem:[#allocation5 + $0x4c] sm:$0xf]
        %v327 = vld [vmem:[#allocation5 + $0x50] sm:$0xf]
        %v328 = vld [vmem:[#allocation5 + $0x54] sm:$0xf]
        %v329 = vld [vmem:[#allocation5 + $0x58] sm:$0xf]
        %v330 = vld [vmem:[#allocation5 + $0x5c] sm:$0xf]
        %v331 = vld [vmem:[#allocation5 + $0x60] sm:$0xf]
        %v332 = vld [vmem:[#allocation5 + $0x64] sm:$0xf]
        %v333 = vld [vmem:[#allocation5 + $0x68] sm:$0xf]
        %v334 = vld [vmem:[#allocation5 + $0x6c] sm:$0xf]
        %v335 = vld [vmem:[#allocation5 + $0x70] sm:$0xf]
        %v336 = vld [vmem:[#allocation5 + $0x74] sm:$0xf]
        %v337 = vld [vmem:[#allocation5 + $0x78] sm:$0xf]
        %v338 = vld [vmem:[#allocation5 + $0x7c] sm:$0xf]
        %v339 = vld [vmem:[#allocation5 + $0x80] sm:$0xf]
        %v340 = vld [vmem:[#allocation5 + $0x84] sm:$0xf]
        %v341 = vld [vmem:[#allocation5 + $0x88] sm:$0xf]
        %v342 = vld [vmem:[#allocation5 + $0x8c] sm:$0xf]
        %v343 = vld [vmem:[#allocation5 + $0x90] sm:$0xf]
        %v344 = vld [vmem:[#allocation5 + $0x94] sm:$0xf]
        %v345 = vld [vmem:[#allocation5 + $0x98] sm:$0xf]
        %v346 = vld [vmem:[#allocation5 + $0x9c] sm:$0xf]
        %v347 = vld [vmem:[%s4] sm:$0x1]
        %v364 = vunpack.c.l.b16 %v291
        %v365 = vunpack.c.l.b16 %v292
        %v366 = vunpack.c.l.b16 %v293
        %v367 = vunpack.c.l.b16 %v294
        %v368 = vunpack.c.l.b16 %v295
        %v369 = vunpack.c.l.b16 %v296
        %v370 = vunpack.c.l.b16 %v297
        %v371 = vunpack.c.l.b16 %v298
        %v372 = vunpack.c.l.b16 %v299
        %v373 = vunpack.c.l.b16 %v300
        %v374 = vunpack.c.l.b16 %v301
        %v375 = vunpack.c.l.b16 %v302
        %v376 = vunpack.c.l.b16 %v303
        %v377 = vunpack.c.l.b16 %v304
        %v378 = vunpack.c.l.b16 %v305
        %v379 = vunpack.c.l.b16 %v306
        %v380 = vpack.c.b16 %v365, %v364
        %v381 = vpack.c.b16 %v367, %v366
        %v382 = vpack.c.b16 %v369, %v368
        %v383 = vpack.c.b16 %v371, %v370
        %v384 = vpack.c.b16 %v373, %v372
        %v385 = vpack.c.b16 %v375, %v374
        %v386 = vpack.c.b16 %v377, %v376
        %v387 = vpack.c.b16 %v379, %v378
        %v388 = vrot.slane %v380, 7
        %v389 = vrot.slane %v381, 7
        %v390 = vrot.slane %v382, 7
        %v391 = vrot.slane %v383, 7
        %v392 = vrot.slane %v384, 7
        %v393 = vrot.slane %v385, 7
        %v394 = vrot.slane %v386, 7
        %v395 = vrot.slane %v387, 7
        %vm396 = vcmask 1040384
        %v399 = vsel %vm396, 0, %v388
        %v401 = vsel %vm396, 0, %v389
        %v403 = vsel %vm396, 0, %v390
        %v405 = vsel %vm396, 0, %v391
        %v407 = vsel %vm396, 0, %v392
        %v409 = vsel %vm396, 0, %v393
        %v411 = vsel %vm396, 0, %v394
        %v413 = vsel %vm396, 0, %v395
        %v414 = vsel %vm396, %v388, 0
        %v415 = vsel %vm396, %v389, 0
        %v416 = vsel %vm396, %v390, 0
        %v417 = vsel %vm396, %v391, 0
        %v418 = vsel %vm396, %v392, 0
        %v419 = vsel %vm396, %v393, 0
        %v420 = vsel %vm396, %v394, 0
        %v421 = vsel %vm396, %v395, 0
        %vm422 = vsmask.f32 7424
        %v423 = vshrl.u32 %v399, 16
        %v425 = vshll.u32 %v399, 16
        %v427 = vrot.slane %v425, 1
        %v428 = vor.u32 %v423, %v427
        %v429 = vshll.u32 %v414, 16
        %v431 = vrot.slane %v429, 1
        %v432 = vsel %vm422, %v428, %v431
        %v433 = vshrl.u32 %v401, 16
        %v435 = vshll.u32 %v401, 16
        %v437 = vrot.slane %v435, 1
        %v438 = vor.u32 %v433, %v437
        %v439 = vshll.u32 %v415, 16
        %v441 = vrot.slane %v439, 1
        %v442 = vsel %vm422, %v438, %v441
        %v443 = vshrl.u32 %v403, 16
        %v445 = vshll.u32 %v403, 16
        %v447 = vrot.slane %v445, 1
        %v448 = vor.u32 %v443, %v447
        %v449 = vshll.u32 %v416, 16
        %v451 = vrot.slane %v449, 1
        %v452 = vsel %vm422, %v448, %v451
        %v453 = vshrl.u32 %v405, 16
        %v455 = vshll.u32 %v405, 16
        %v457 = vrot.slane %v455, 1
        %v458 = vor.u32 %v453, %v457
        %v459 = vshll.u32 %v417, 16
        %v461 = vrot.slane %v459, 1
        %v462 = vsel %vm422, %v458, %v461
        %v463 = vshrl.u32 %v407, 16
        %v465 = vshll.u32 %v407, 16
        %v467 = vrot.slane %v465, 1
        %v468 = vor.u32 %v463, %v467
        %v469 = vshll.u32 %v418, 16
        %v471 = vrot.slane %v469, 1
        %v472 = vsel %vm422, %v468, %v471
        %v473 = vshrl.u32 %v409, 16
        %v475 = vshll.u32 %v409, 16
        %v477 = vrot.slane %v475, 1
        %v478 = vor.u32 %v473, %v477
        %v479 = vshll.u32 %v419, 16
        %v481 = vrot.slane %v479, 1
        %v482 = vsel %vm422, %v478, %v481
        %v483 = vshrl.u32 %v411, 16
        %v485 = vshll.u32 %v411, 16
        %v487 = vrot.slane %v485, 1
        %v488 = vor.u32 %v483, %v487
        %v489 = vshll.u32 %v420, 16
        %v491 = vrot.slane %v489, 1
        %v492 = vsel %vm422, %v488, %v491
        %v493 = vshrl.u32 %v413, 16
        %v495 = vshll.u32 %v413, 16
        %v497 = vrot.slane %v495, 1
        %v498 = vor.u32 %v493, %v497
        %v499 = vshll.u32 %v421, 16
        %v501 = vrot.slane %v499, 1
        %v502 = vsel %vm422, %v498, %v501
        %503 = vrot.lane.b32.xlu0 %v432, 64
        %v504 = vpop.permute.xlu0 %503
        %505 = vrot.lane.b32.xlu0 %v442, 64
        %v506 = vpop.permute.xlu0 %505
        %507 = vrot.lane.b32.xlu0 %v452, 64
        %v508 = vpop.permute.xlu0 %507
        %509 = vrot.lane.b32.xlu0 %v462, 64
        %v510 = vpop.permute.xlu0 %509
        %511 = vrot.lane.b32.xlu0 %v472, 64
        %v512 = vpop.permute.xlu0 %511
        %513 = vrot.lane.b32.xlu0 %v482, 64
        %v514 = vpop.permute.xlu0 %513
        %515 = vrot.lane.b32.xlu0 %v492, 64
        %v516 = vpop.permute.xlu0 %515
        %517 = vrot.lane.b32.xlu0 %v502, 64
        %v518 = vpop.permute.xlu0 %517
        %vm535 = vcmask 1046528
        %v536 = vrot.slane %v399, 1
        %v537 = vrot.slane %v414, 1
        %v538 = vsel %vm535, %v536, %v537
        %v539 = vrot.slane %v401, 1
        %v540 = vrot.slane %v415, 1
        %v541 = vsel %vm535, %v539, %v540
        %v542 = vrot.slane %v403, 1
        %v543 = vrot.slane %v416, 1
        %v544 = vsel %vm535, %v542, %v543
        %v545 = vrot.slane %v405, 1
        %v546 = vrot.slane %v417, 1
        %v547 = vsel %vm535, %v545, %v546
        %v548 = vrot.slane %v407, 1
        %v549 = vrot.slane %v418, 1
        %v550 = vsel %vm535, %v548, %v549
        %v551 = vrot.slane %v409, 1
        %v552 = vrot.slane %v419, 1
        %v553 = vsel %vm535, %v551, %v552
        %v554 = vrot.slane %v411, 1
        %v555 = vrot.slane %v420, 1
        %v556 = vsel %vm535, %v554, %v555
        %v557 = vrot.slane %v413, 1
        %v558 = vrot.slane %v421, 1
        %v559 = vsel %vm535, %v557, %v558
        %vm560 = vsmask.f32 6400
        %v561 = vrot.slane %v423, 1
        %v562 = vrot.slane %v425, 2
        %v563 = vor.u32 %v561, %v562
        %v564 = vshrl.u32 %v414, 16
        %v566 = vrot.slane %v564, 1
        %v567 = vrot.slane %v429, 2
        %v568 = vor.u32 %v566, %v567
        %v569 = vsel %vm560, %v563, %v568
        %v570 = vrot.slane %v433, 1
        %v571 = vrot.slane %v435, 2
        %v572 = vor.u32 %v570, %v571
        %v573 = vshrl.u32 %v415, 16
        %v575 = vrot.slane %v573, 1
        %v576 = vrot.slane %v439, 2
        %v577 = vor.u32 %v575, %v576
        %v578 = vsel %vm560, %v572, %v577
        %v579 = vrot.slane %v443, 1
        %v580 = vrot.slane %v445, 2
        %v581 = vor.u32 %v579, %v580
        %v582 = vshrl.u32 %v416, 16
        %v584 = vrot.slane %v582, 1
        %v585 = vrot.slane %v449, 2
        %v586 = vor.u32 %v584, %v585
        %v587 = vsel %vm560, %v581, %v586
        %v588 = vrot.slane %v453, 1
        %v589 = vrot.slane %v455, 2
        %v590 = vor.u32 %v588, %v589
        %v591 = vshrl.u32 %v417, 16
        %v593 = vrot.slane %v591, 1
        %v594 = vrot.slane %v459, 2
        %v595 = vor.u32 %v593, %v594
        %v596 = vsel %vm560, %v590, %v595
        %v597 = vrot.slane %v463, 1
        %v598 = vrot.slane %v465, 2
        %v599 = vor.u32 %v597, %v598
        %v600 = vshrl.u32 %v418, 16
        %v602 = vrot.slane %v600, 1
        %v603 = vrot.slane %v469, 2
        %v604 = vor.u32 %v602, %v603
        %v605 = vsel %vm560, %v599, %v604
        %v606 = vrot.slane %v473, 1
        %v607 = vrot.slane %v475, 2
        %v608 = vor.u32 %v606, %v607
        %v609 = vshrl.u32 %v419, 16
        %v611 = vrot.slane %v609, 1
        %v612 = vrot.slane %v479, 2
        %v613 = vor.u32 %v611, %v612
        %v614 = vsel %vm560, %v608, %v613
        %v615 = vrot.slane %v483, 1
        %v616 = vrot.slane %v485, 2
        %v617 = vor.u32 %v615, %v616
        %v618 = vshrl.u32 %v420, 16
        %v620 = vrot.slane %v618, 1
        %v621 = vrot.slane %v489, 2
        %v622 = vor.u32 %v620, %v621
        %v623 = vsel %vm560, %v617, %v622
        %v624 = vrot.slane %v493, 1
        %v625 = vrot.slane %v495, 2
        %v626 = vor.u32 %v624, %v625
        %v627 = vshrl.u32 %v421, 16
        %v629 = vrot.slane %v627, 1
        %v630 = vrot.slane %v499, 2
        %v631 = vor.u32 %v629, %v630
        %v632 = vsel %vm560, %v626, %v631
        %633 = vrot.lane.b32.xlu0 %v569, 64
        %v634 = vpop.permute.xlu0 %633
        %635 = vrot.lane.b32.xlu0 %v578, 64
        %v636 = vpop.permute.xlu0 %635
        %637 = vrot.lane.b32.xlu0 %v587, 64
        %v638 = vpop.permute.xlu0 %637
        %639 = vrot.lane.b32.xlu0 %v596, 64
        %v640 = vpop.permute.xlu0 %639
        %641 = vrot.lane.b32.xlu0 %v605, 64
        %v642 = vpop.permute.xlu0 %641
        %643 = vrot.lane.b32.xlu0 %v614, 64
        %v644 = vpop.permute.xlu0 %643
        %645 = vrot.lane.b32.xlu0 %v623, 64
        %v646 = vpop.permute.xlu0 %645
        %647 = vrot.lane.b32.xlu0 %v632, 64
        %v648 = vpop.permute.xlu0 %647
        %vm649 = vcmask 1045504
        %v650 = vrot.slane %v399, 2
        %v651 = vrot.slane %v414, 2
        %v652 = vsel %vm649, %v650, %v651
        %v653 = vrot.slane %v401, 2
        %v654 = vrot.slane %v415, 2
        %v655 = vsel %vm649, %v653, %v654
        %v656 = vrot.slane %v403, 2
        %v657 = vrot.slane %v416, 2
        %v658 = vsel %vm649, %v656, %v657
        %v659 = vrot.slane %v405, 2
        %v660 = vrot.slane %v417, 2
        %v661 = vsel %vm649, %v659, %v660
        %v662 = vrot.slane %v407, 2
        %v663 = vrot.slane %v418, 2
        %v664 = vsel %vm649, %v662, %v663
        %v665 = vrot.slane %v409, 2
        %v666 = vrot.slane %v419, 2
        %v667 = vsel %vm649, %v665, %v666
        %v668 = vrot.slane %v411, 2
        %v669 = vrot.slane %v420, 2
        %v670 = vsel %vm649, %v668, %v669
        %v671 = vrot.slane %v413, 2
        %v672 = vrot.slane %v421, 2
        %v673 = vsel %vm649, %v671, %v672
        %vm674 = vcmask 523264
        %v676 = vsel %vm674, %v399, %v504
        %v679 = vsel %vm674, %v401, %v506
        %v682 = vsel %vm674, %v403, %v508
        %v685 = vsel %vm674, %v405, %v510
        %v688 = vsel %vm674, %v407, %v512
        %v691 = vsel %vm674, %v409, %v514
        %v694 = vsel %vm674, %v411, %v516
        %v697 = vsel %vm674, %v413, %v518
        %v701 = vsel %vm674, %v538, %v634
        %v705 = vsel %vm674, %v541, %v636
        %v709 = vsel %vm674, %v544, %v638
        %v713 = vsel %vm674, %v547, %v640
        %v717 = vsel %vm674, %v550, %v642
        %v721 = vsel %vm674, %v553, %v644
        %v725 = vsel %vm674, %v556, %v646
        %v729 = vsel %vm674, %v559, %v648
        %v732 = vlaneseq
        %v733 = vshrl.u32 %v732, 7
        %v734 = vsub.s32 0, %v733
        %v735 = vrot.slane %v347, %v734
        %v777 = vunpack.c.l.b16 %v307
        %v778 = vunpack.c.l.b16 %v308
        %v779 = vunpack.c.l.b16 %v309
        %v780 = vunpack.c.l.b16 %v310
        %v781 = vunpack.c.l.b16 %v311
        %v782 = vunpack.c.l.b16 %v312
        %v783 = vunpack.c.l.b16 %v313
        %v784 = vunpack.c.l.b16 %v314
        %v785 = vunpack.c.l.b16 %v315
        %v786 = vunpack.c.l.b16 %v316
        %v787 = vunpack.c.l.b16 %v317
        %v788 = vunpack.c.l.b16 %v318
        %v789 = vunpack.c.l.b16 %v319
        %v790 = vunpack.c.l.b16 %v320
        %v791 = vunpack.c.l.b16 %v321
        %v792 = vunpack.c.l.b16 %v322
        %v793 = vunpack.c.l.b16 %v323
        %v794 = vunpack.c.l.b16 %v324
        %v795 = vunpack.c.l.b16 %v325
        %v796 = vunpack.c.l.b16 %v326
        %v797 = vunpack.c.l.b16 %v327
        %v798 = vunpack.c.l.b16 %v328
        %v799 = vunpack.c.l.b16 %v329
        %v800 = vunpack.c.l.b16 %v330
        %v801 = vunpack.c.l.b16 %v331
        %v802 = vunpack.c.l.b16 %v332
        %v803 = vunpack.c.l.b16 %v333
        %v804 = vunpack.c.l.b16 %v334
        %v805 = vunpack.c.l.b16 %v335
        %v806 = vunpack.c.l.b16 %v336
        %v807 = vunpack.c.l.b16 %v337
        %v808 = vunpack.c.l.b16 %v338
        %v809 = vunpack.c.l.b16 %v339
        %v810 = vunpack.c.l.b16 %v340
        %v811 = vunpack.c.l.b16 %v341
        %v812 = vunpack.c.l.b16 %v342
        %v813 = vunpack.c.l.b16 %v343
        %v814 = vunpack.c.l.b16 %v344
        %v815 = vunpack.c.l.b16 %v345
        %v816 = vunpack.c.l.b16 %v346
        %v817 = vpack.c.b16 %v778, %v777
        %v818 = vpack.c.b16 %v780, %v779
        %v819 = vpack.c.b16 %v782, %v781
        %v820 = vpack.c.b16 %v784, %v783
        %v821 = vpack.c.b16 %v786, %v785
        %v822 = vpack.c.b16 %v788, %v787
        %v823 = vpack.c.b16 %v790, %v789
        %v824 = vpack.c.b16 %v792, %v791
        %v825 = vpack.c.b16 %v794, %v793
        %v826 = vpack.c.b16 %v796, %v795
        %v827 = vpack.c.b16 %v798, %v797
        %v828 = vpack.c.b16 %v800, %v799
        %v829 = vpack.c.b16 %v802, %v801
        %v830 = vpack.c.b16 %v804, %v803
        %v831 = vpack.c.b16 %v806, %v805
        %v832 = vpack.c.b16 %v808, %v807
        %v833 = vpack.c.b16 %v810, %v809
        %v834 = vpack.c.b16 %v812, %v811
        %v835 = vpack.c.b16 %v814, %v813
        %v836 = vpack.c.b16 %v816, %v815
        %v858 = vsel %vm674, %v652, 0
        %v861 = vsel %vm674, %v655, 0
        %v864 = vsel %vm674, %v658, 0
        %v867 = vsel %vm674, %v661, 0
        %v870 = vsel %vm674, %v664, 0
        %v873 = vsel %vm674, %v667, 0
        %v876 = vsel %vm674, %v670, 0
        %v879 = vsel %vm674, %v673, 0
        %881 = vmatprep.subr.bf16.mxu0 0
        %882 = vmatpush1.bf16.msra.mxu0 %v824
        %883 = vmatprep.subr.bf16.mxu0 0
        %884 = vmatpush1.bf16.msra.mxu0 %v823
        %885 = vmatprep.subr.bf16.mxu0 0
        %886 = vmatpush1.bf16.msra.mxu0 %v822
        %887 = vmatprep.subr.bf16.mxu0 0
        %888 = vmatpush1.bf16.msra.mxu0 %v821
        %889 = vmatprep.subr.bf16.mxu0 0
        %890 = vmatpush1.bf16.msra.mxu0 %v820
        %891 = vmatprep.subr.bf16.mxu0 0
        %892 = vmatpush1.bf16.msra.mxu0 %v819
        %893 = vmatprep.subr.bf16.mxu0 0
        %894 = vmatpush1.bf16.msra.mxu0 %v818
        %895 = vmatprep.subr.bf16.mxu0 0
        %896 = vmatpush1.bf16.msra.mxu0 %v817
        %897 = vmatprep.subr.bf16.mxu0 0
        %898 = vmatpush2.bf16.msra.mxu0 %v832
        %899 = vmatprep.subr.bf16.mxu0 0
        %900 = vmatpush2.bf16.msra.mxu0 %v831
        %901 = vmatprep.subr.bf16.mxu0 0
        %902 = vmatpush2.bf16.msra.mxu0 %v830
        %903 = vmatprep.subr.bf16.mxu0 0
        %904 = vmatpush2.bf16.msra.mxu0 %v829
        %905 = vmatprep.subr.bf16.mxu0 0
        %906 = vmatpush2.bf16.msra.mxu0 %v828
        %907 = vmatprep.subr.bf16.mxu0 0
        %908 = vmatpush2.bf16.msra.mxu0 %v827
        %909 = vmatprep.subr.bf16.mxu0 0
        %910 = vmatpush2.bf16.msra.mxu0 %v826
        %911 = vmatprep.subr.bf16.mxu0 0
        %912 = vmatpush2.bf16.msra.mxu0 %v825
        %913 = vmatprep.mubr.bf16.mxu0 %v701
        %914 = vmatmul.mubr.bf16.gmra.mxu0 %v676
        %v915 = vpop.f32.mrf.mxu0
        %v916 = vadd.f32 %v735, %v915
        %v917 = vpop.f32.mrf.mxu0
        %v918 = vpop.f32.mrf.mxu0
        %v919 = vadd.f32 %v735, %v918
        %v920 = vpop.f32.mrf.mxu0
        %921 = vmatprep.mubr.bf16.mxu0 %v705
        %922 = vmatmul.mubr.bf16.gmra.mxu0 %v679
        %v923 = vpop.f32.mrf.mxu0
        %v924 = vadd.f32 %v735, %v923
        %v925 = vpop.f32.mrf.mxu0
        %v926 = vpop.f32.mrf.mxu0
        %v927 = vadd.f32 %v735, %v926
        %v928 = vpop.f32.mrf.mxu0
        %929 = vmatprep.mubr.bf16.mxu0 %v709
        %930 = vmatmul.mubr.bf16.gmra.mxu0 %v682
        %v931 = vpop.f32.mrf.mxu0
        %v932 = vadd.f32 %v735, %v931
        %v933 = vpop.f32.mrf.mxu0
        %v934 = vpop.f32.mrf.mxu0
        %v935 = vadd.f32 %v735, %v934
        %v936 = vpop.f32.mrf.mxu0
        %937 = vmatprep.mubr.bf16.mxu0 %v713
        %938 = vmatmul.mubr.bf16.gmra.mxu0 %v685
        %v939 = vpop.f32.mrf.mxu0
        %v940 = vadd.f32 %v735, %v939
        %v941 = vpop.f32.mrf.mxu0
        %v942 = vpop.f32.mrf.mxu0
        %v943 = vadd.f32 %v735, %v942
        %v944 = vpop.f32.mrf.mxu0
        %945 = vmatprep.mubr.bf16.mxu0 %v717
        %946 = vmatmul.mubr.bf16.gmra.mxu0 %v688
        %v947 = vpop.f32.mrf.mxu0
        %v948 = vadd.f32 %v735, %v947
        %v949 = vpop.f32.mrf.mxu0
        %v950 = vpop.f32.mrf.mxu0
        %v951 = vadd.f32 %v735, %v950
        %v952 = vpop.f32.mrf.mxu0
        %953 = vmatprep.mubr.bf16.mxu0 %v721
        %954 = vmatmul.mubr.bf16.gmra.mxu0 %v691
        %v955 = vpop.f32.mrf.mxu0
        %v956 = vadd.f32 %v735, %v955
        %v957 = vpop.f32.mrf.mxu0
        %v958 = vpop.f32.mrf.mxu0
        %v959 = vadd.f32 %v735, %v958
        %v960 = vpop.f32.mrf.mxu0
        %961 = vmatprep.mubr.bf16.mxu0 %v725
        %962 = vmatmul.mubr.bf16.gmra.mxu0 %v694
        %v963 = vpop.f32.mrf.mxu0
        %v964 = vadd.f32 %v735, %v963
        %v965 = vpop.f32.mrf.mxu0
        %v966 = vpop.f32.mrf.mxu0
        %v967 = vadd.f32 %v735, %v966
        %v968 = vpop.f32.mrf.mxu0
        %969 = vmatprep.mubr.bf16.mxu0 %v729
        %970 = vmatmul.mubr.bf16.gmra.mxu0 %v697
        %v971 = vpop.f32.mrf.mxu0
        %v972 = vadd.f32 %v735, %v971
        %v973 = vpop.f32.mrf.mxu0
        %v974 = vpop.f32.mrf.mxu0
        %v975 = vadd.f32 %v735, %v974
        %v976 = vpop.f32.mrf.mxu0
        %977 = vdwg.mxu0
        %978 = vmatprep.subr.bf16.mxu0 0
        %979 = vmatpush1.bf16.msra.mxu0 0
        %980 = vmatprep.subr.bf16.mxu0 0
        %981 = vmatpush1.bf16.msra.mxu0 0
        %982 = vmatprep.subr.bf16.mxu0 0
        %983 = vmatpush1.bf16.msra.mxu0 0
        %984 = vmatprep.subr.bf16.mxu0 0
        %985 = vmatpush1.bf16.msra.mxu0 0
        %986 = vmatprep.subr.bf16.mxu0 0
        %987 = vmatpush1.bf16.msra.mxu0 %v836
        %988 = vmatprep.subr.bf16.mxu0 0
        %989 = vmatpush1.bf16.msra.mxu0 %v835
        %990 = vmatprep.subr.bf16.mxu0 0
        %991 = vmatpush1.bf16.msra.mxu0 %v834
        %992 = vmatprep.subr.bf16.mxu0 0
        %993 = vmatpush1.bf16.msra.mxu0 %v833
        %994 = vmatprep.subr.bf16.mxu0 0
        %995 = vmatpush2.bf16.msra.mxu0 0
        %996 = vmatprep.subr.bf16.mxu0 0
        %997 = vmatpush2.bf16.msra.mxu0 0
        %998 = vmatprep.subr.bf16.mxu0 0
        %999 = vmatpush2.bf16.msra.mxu0 0
        %1000 = vmatprep.subr.bf16.mxu0 0
        %1001 = vmatpush2.bf16.msra.mxu0 0
        %1002 = vmatprep.subr.bf16.mxu0 0
        %1003 = vmatpush2.bf16.msra.mxu0 0
        %1004 = vmatprep.subr.bf16.mxu0 0
        %1005 = vmatpush2.bf16.msra.mxu0 0
        %1006 = vmatprep.subr.bf16.mxu0 0
        %1007 = vmatpush2.bf16.msra.mxu0 0
        %1008 = vmatprep.subr.bf16.mxu0 0
        %1009 = vmatpush2.bf16.msra.mxu0 0
        %1010 = vmatprep.mubr.bf16.mxu0 0
        %1011 = vmatmul.mubr.bf16.gmra.mxu0 %v858
        %v1012 = vpop.f32.mrf.mxu0
        %v1013 = vadd.f32 %v916, %v1012
        %v1014 = vpop.f32.mrf.mxu0
        %v1015 = vpop.f32.mrf.mxu0
        %v1016 = vadd.f32 %v919, %v1015
        %v1017 = vpop.f32.mrf.mxu0
        %1018 = vmatprep.mubr.bf16.mxu0 0
        %1019 = vmatmul.mubr.bf16.gmra.mxu0 %v861
        %v1020 = vpop.f32.mrf.mxu0
        %v1021 = vadd.f32 %v924, %v1020
        %v1022 = vpop.f32.mrf.mxu0
        %v1023 = vpop.f32.mrf.mxu0
        %v1024 = vadd.f32 %v927, %v1023
        %v1025 = vpop.f32.mrf.mxu0
        %1026 = vmatprep.mubr.bf16.mxu0 0
        %1027 = vmatmul.mubr.bf16.gmra.mxu0 %v864
        %v1028 = vpop.f32.mrf.mxu0
        %v1029 = vadd.f32 %v932, %v1028
        %v1030 = vpop.f32.mrf.mxu0
        %v1031 = vpop.f32.mrf.mxu0
        %v1032 = vadd.f32 %v935, %v1031
        %v1033 = vpop.f32.mrf.mxu0
        %1034 = vmatprep.mubr.bf16.mxu0 0
        %1035 = vmatmul.mubr.bf16.gmra.mxu0 %v867
        %v1036 = vpop.f32.mrf.mxu0
        %v1037 = vadd.f32 %v940, %v1036
        %v1038 = vpop.f32.mrf.mxu0
        %v1039 = vpop.f32.mrf.mxu0
        %v1040 = vadd.f32 %v943, %v1039
        %v1041 = vpop.f32.mrf.mxu0
        %1042 = vmatprep.mubr.bf16.mxu0 0
        %1043 = vmatmul.mubr.bf16.gmra.mxu0 %v870
        %v1044 = vpop.f32.mrf.mxu0
        %v1045 = vadd.f32 %v948, %v1044
        %v1046 = vpop.f32.mrf.mxu0
        %v1047 = vpop.f32.mrf.mxu0
        %v1048 = vadd.f32 %v951, %v1047
        %v1049 = vpop.f32.mrf.mxu0
        %1050 = vmatprep.mubr.bf16.mxu0 0
        %1051 = vmatmul.mubr.bf16.gmra.mxu0 %v873
        %v1052 = vpop.f32.mrf.mxu0
        %v1053 = vadd.f32 %v956, %v1052
        %v1054 = vpop.f32.mrf.mxu0
        %v1055 = vpop.f32.mrf.mxu0
        %v1056 = vadd.f32 %v959, %v1055
        %v1057 = vpop.f32.mrf.mxu0
        %1058 = vmatprep.mubr.bf16.mxu0 0
        %1059 = vmatmul.mubr.bf16.gmra.mxu0 %v876
        %v1060 = vpop.f32.mrf.mxu0
        %v1061 = vadd.f32 %v964, %v1060
        %v1062 = vpop.f32.mrf.mxu0
        %v1063 = vpop.f32.mrf.mxu0
        %v1064 = vadd.f32 %v967, %v1063
        %v1065 = vpop.f32.mrf.mxu0
        %1066 = vmatprep.mubr.bf16.mxu0 0
        %1067 = vmatmul.mubr.bf16.gmra.mxu0 %v879
        %v1068 = vpop.f32.mrf.mxu0
        %v1069 = vadd.f32 %v972, %v1068
        %v1070 = vpop.f32.mrf.mxu0
        %v1071 = vpop.f32.mrf.mxu0
        %v1072 = vadd.f32 %v975, %v1071
        %v1073 = vpop.f32.mrf.mxu0
        %1074 = vdwg.mxu0
        %v1075 = vmax.f32 %v1013, 0.0
        %v1076 = vmax.f32 %v1016, 0.0
        %v1077 = vmax.f32 %v1021, 0.0
        %v1078 = vmax.f32 %v1024, 0.0
        %v1079 = vmax.f32 %v1029, 0.0
        %v1080 = vmax.f32 %v1032, 0.0
        %v1081 = vmax.f32 %v1037, 0.0
        %v1082 = vmax.f32 %v1040, 0.0
        %v1083 = vmax.f32 %v1045, 0.0
        %v1084 = vmax.f32 %v1048, 0.0
        %v1085 = vmax.f32 %v1053, 0.0
        %v1086 = vmax.f32 %v1056, 0.0
        %v1087 = vmax.f32 %v1061, 0.0
        %v1088 = vmax.f32 %v1064, 0.0
        %v1089 = vmax.f32 %v1069, 0.0
        %v1090 = vmax.f32 %v1072, 0.0
        %v1091 = vpack.c.bf16 %v1076, %v1075
        %v1092 = vpack.c.bf16 %v1078, %v1077
        %v1093 = vpack.c.bf16 %v1080, %v1079
        %v1094 = vpack.c.bf16 %v1082, %v1081
        %v1095 = vpack.c.bf16 %v1084, %v1083
        %v1096 = vpack.c.bf16 %v1086, %v1085
        %v1097 = vpack.c.bf16 %v1088, %v1087
        %v1098 = vpack.c.bf16 %v1090, %v1089
        %v1099 = vld [vmem:[#allocation7] sm:$0xf]
        %v1100 = vld [vmem:[#allocation7 + $0x4] sm:$0xf]
        %v1101 = vld [vmem:[#allocation7 + $0x8] sm:$0xf]
        %v1102 = vld [vmem:[#allocation7 + $0xc] sm:$0xf]
        %v1103 = vld [vmem:[#allocation7 + $0x10] sm:$0xf]
        %v1104 = vld [vmem:[#allocation7 + $0x14] sm:$0xf]
        %v1105 = vld [vmem:[#allocation7 + $0x18] sm:$0xf]
        %v1106 = vld [vmem:[#allocation7 + $0x1c] sm:$0xf]
        %v1107 = vld [vmem:[#allocation7 + $0x20] sm:$0xf]
        %v1108 = vld [vmem:[#allocation7 + $0x24] sm:$0xf]
        %v1109 = vld [vmem:[#allocation7 + $0x28] sm:$0xf]
        %v1110 = vld [vmem:[#allocation7 + $0x2c] sm:$0xf]
        %v1111 = vld [vmem:[#allocation7 + $0x30] sm:$0xf]
        %v1112 = vld [vmem:[#allocation7 + $0x34] sm:$0xf]
        %v1113 = vld [vmem:[#allocation7 + $0x38] sm:$0xf]
        %v1114 = vld [vmem:[#allocation7 + $0x3c] sm:$0xf]
        %v1115 = vld [vmem:[#allocation7 + $0x40] sm:$0xf]
        %v1116 = vld [vmem:[#allocation7 + $0x44] sm:$0xf]
        %v1117 = vld [vmem:[#allocation7 + $0x48] sm:$0xf]
        %v1118 = vld [vmem:[#allocation7 + $0x4c] sm:$0xf]
        %v1119 = vld [vmem:[#allocation7 + $0x50] sm:$0xf]
        %v1120 = vld [vmem:[#allocation7 + $0x54] sm:$0xf]
        %v1121 = vld [vmem:[#allocation7 + $0x58] sm:$0xf]
        %v1122 = vld [vmem:[#allocation7 + $0x5c] sm:$0xf]
        %v1123 = vld [vmem:[#allocation7 + $0x60] sm:$0xf]
        %v1124 = vld [vmem:[#allocation7 + $0x64] sm:$0xf]
        %v1125 = vld [vmem:[#allocation7 + $0x68] sm:$0xf]
        %v1126 = vld [vmem:[#allocation7 + $0x6c] sm:$0xf]
        %v1127 = vld [vmem:[#allocation7 + $0x70] sm:$0xf]
        %v1128 = vld [vmem:[#allocation7 + $0x74] sm:$0xf]
        %v1129 = vld [vmem:[#allocation7 + $0x78] sm:$0xf]
        %v1130 = vld [vmem:[#allocation7 + $0x7c] sm:$0xf]
        %v1131 = vld [vmem:[#allocation7 + $0x80] sm:$0xf]
        %v1132 = vld [vmem:[#allocation7 + $0x84] sm:$0xf]
        %v1133 = vld [vmem:[#allocation7 + $0x88] sm:$0xf]
        %v1134 = vld [vmem:[#allocation7 + $0x8c] sm:$0xf]
        %v1135 = vld [vmem:[#allocation7 + $0x90] sm:$0xf]
        %v1136 = vld [vmem:[#allocation7 + $0x94] sm:$0xf]
        %v1137 = vld [vmem:[#allocation7 + $0x98] sm:$0xf]
        %v1138 = vld [vmem:[#allocation7 + $0x9c] sm:$0xf]
        %v1139 = vld [vmem:[#allocation7 + $0xa0] sm:$0xf]
        %v1140 = vld [vmem:[#allocation7 + $0xa4] sm:$0xf]
        %v1141 = vld [vmem:[#allocation7 + $0xa8] sm:$0xf]
        %v1142 = vld [vmem:[#allocation7 + $0xac] sm:$0xf]
        %v1143 = vld [vmem:[#allocation7 + $0xb0] sm:$0xf]
        %v1144 = vld [vmem:[#allocation7 + $0xb4] sm:$0xf]
        %v1145 = vld [vmem:[#allocation7 + $0xb8] sm:$0xf]
        %v1146 = vld [vmem:[#allocation7 + $0xbc] sm:$0xf]
        %v1147 = vld [vmem:[#allocation7 + $0xc0] sm:$0xf]
        %v1148 = vld [vmem:[#allocation7 + $0xc4] sm:$0xf]
        %v1149 = vld [vmem:[#allocation7 + $0xc8] sm:$0xf]
        %v1150 = vld [vmem:[#allocation7 + $0xcc] sm:$0xf]
        %v1151 = vld [vmem:[#allocation7 + $0xd0] sm:$0xf]
        %v1152 = vld [vmem:[#allocation7 + $0xd4] sm:$0xf]
        %v1153 = vld [vmem:[#allocation7 + $0xd8] sm:$0xf]
        %v1154 = vld [vmem:[#allocation7 + $0xdc] sm:$0xf]
        %v1155 = vld [vmem:[#allocation7 + $0xe0] sm:$0xf]
        %v1156 = vld [vmem:[#allocation7 + $0xe4] sm:$0xf]
        %v1157 = vld [vmem:[#allocation7 + $0xe8] sm:$0xf]
        %v1158 = vld [vmem:[#allocation7 + $0xec] sm:$0xf]
        %v1159 = vld [vmem:[#allocation7 + $0xf0] sm:$0xf]
        %v1160 = vld [vmem:[#allocation7 + $0xf4] sm:$0xf]
        %v1161 = vld [vmem:[#allocation7 + $0xf8] sm:$0xf]
        %v1162 = vld [vmem:[#allocation7 + $0xfc] sm:$0xf]
        %v1163 = vld [vmem:[#allocation7 + $0x100] sm:$0xf]
        %v1164 = vld [vmem:[#allocation7 + $0x104] sm:$0xf]
        %v1165 = vld [vmem:[#allocation7 + $0x108] sm:$0xf]
        %v1166 = vld [vmem:[#allocation7 + $0x10c] sm:$0xf]
        %v1167 = vld [vmem:[#allocation7 + $0x110] sm:$0xf]
        %v1168 = vld [vmem:[#allocation7 + $0x114] sm:$0xf]
        %v1169 = vld [vmem:[#allocation7 + $0x118] sm:$0xf]
        %v1170 = vld [vmem:[#allocation7 + $0x11c] sm:$0xf]
        %v1171 = vld [vmem:[#allocation7 + $0x120] sm:$0xf]
        %v1172 = vld [vmem:[#allocation7 + $0x124] sm:$0xf]
        %v1173 = vld [vmem:[#allocation7 + $0x128] sm:$0xf]
        %v1174 = vld [vmem:[#allocation7 + $0x12c] sm:$0xf]
        %v1175 = vld [vmem:[#allocation7 + $0x130] sm:$0xf]
        %v1176 = vld [vmem:[#allocation7 + $0x134] sm:$0xf]
        %v1177 = vld [vmem:[#allocation7 + $0x138] sm:$0xf]
        %v1178 = vld [vmem:[#allocation7 + $0x13c] sm:$0xf]
        %s1179 = scalar_lea.vmem %s4, 1
        %v1180 = vld [vmem:[%s1179] sm:$0x1]
        %v1189 = vrot.slane %v1091, 7
        %v1190 = vrot.slane %v1092, 7
        %v1191 = vrot.slane %v1093, 7
        %v1192 = vrot.slane %v1094, 7
        %v1193 = vrot.slane %v1095, 7
        %v1194 = vrot.slane %v1096, 7
        %v1195 = vrot.slane %v1097, 7
        %v1196 = vrot.slane %v1098, 7
        %v1198 = vsel %vm396, 0, %v1189
        %v1201 = vsel %vm396, 0, %v1190
        %v1204 = vsel %vm396, 0, %v1191
        %v1207 = vsel %vm396, 0, %v1192
        %v1210 = vsel %vm396, 0, %v1193
        %v1213 = vsel %vm396, 0, %v1194
        %v1216 = vsel %vm396, 0, %v1195
        %v1219 = vsel %vm396, 0, %v1196
        %v1221 = vsel %vm396, %v1189, 0
        %v1222 = vsel %vm396, %v1190, 0
        %v1223 = vsel %vm396, %v1191, 0
        %v1224 = vsel %vm396, %v1192, 0
        %v1225 = vsel %vm396, %v1193, 0
        %v1226 = vsel %vm396, %v1194, 0
        %v1227 = vsel %vm396, %v1195, 0
        %v1228 = vsel %vm396, %v1196, 0
        %v1229 = vshrl.u32 %v1198, 16
        %v1231 = vshll.u32 %v1198, 16
        %v1233 = vrot.slane %v1231, 1
        %v1234 = vor.u32 %v1229, %v1233
        %v1235 = vshll.u32 %v1221, 16
        %v1237 = vrot.slane %v1235, 1
        %v1238 = vsel %vm422, %v1234, %v1237
        %v1239 = vshrl.u32 %v1201, 16
        %v1241 = vshll.u32 %v1201, 16
        %v1243 = vrot.slane %v1241, 1
        %v1244 = vor.u32 %v1239, %v1243
        %v1245 = vshll.u32 %v1222, 16
        %v1247 = vrot.slane %v1245, 1
        %v1248 = vsel %vm422, %v1244, %v1247
        %v1249 = vshrl.u32 %v1204, 16
        %v1251 = vshll.u32 %v1204, 16
        %v1253 = vrot.slane %v1251, 1
        %v1254 = vor.u32 %v1249, %v1253
        %v1255 = vshll.u32 %v1223, 16
        %v1257 = vrot.slane %v1255, 1
        %v1258 = vsel %vm422, %v1254, %v1257
        %v1259 = vshrl.u32 %v1207, 16
        %v1261 = vshll.u32 %v1207, 16
        %v1263 = vrot.slane %v1261, 1
        %v1264 = vor.u32 %v1259, %v1263
        %v1265 = vshll.u32 %v1224, 16
        %v1267 = vrot.slane %v1265, 1
        %v1268 = vsel %vm422, %v1264, %v1267
        %v1269 = vshrl.u32 %v1210, 16
        %v1271 = vshll.u32 %v1210, 16
        %v1273 = vrot.slane %v1271, 1
        %v1274 = vor.u32 %v1269, %v1273
        %v1275 = vshll.u32 %v1225, 16
        %v1277 = vrot.slane %v1275, 1
        %v1278 = vsel %vm422, %v1274, %v1277
        %v1279 = vshrl.u32 %v1213, 16
        %v1281 = vshll.u32 %v1213, 16
        %v1283 = vrot.slane %v1281, 1
        %v1284 = vor.u32 %v1279, %v1283
        %v1285 = vshll.u32 %v1226, 16
        %v1287 = vrot.slane %v1285, 1
        %v1288 = vsel %vm422, %v1284, %v1287
        %v1289 = vshrl.u32 %v1216, 16
        %v1291 = vshll.u32 %v1216, 16
        %v1293 = vrot.slane %v1291, 1
        %v1294 = vor.u32 %v1289, %v1293
        %v1295 = vshll.u32 %v1227, 16
        %v1297 = vrot.slane %v1295, 1
        %v1298 = vsel %vm422, %v1294, %v1297
        %v1299 = vshrl.u32 %v1219, 16
        %v1301 = vshll.u32 %v1219, 16
        %v1303 = vrot.slane %v1301, 1
        %v1304 = vor.u32 %v1299, %v1303
        %v1305 = vshll.u32 %v1228, 16
        %v1307 = vrot.slane %v1305, 1
        %v1308 = vsel %vm422, %v1304, %v1307
        %v1333 = vrot.slane %v1198, 1
        %v1334 = vrot.slane %v1221, 1
        %v1335 = vsel %vm535, %v1333, %v1334
        %v1336 = vrot.slane %v1201, 1
        %v1337 = vrot.slane %v1222, 1
        %v1338 = vsel %vm535, %v1336, %v1337
        %v1339 = vrot.slane %v1204, 1
        %v1340 = vrot.slane %v1223, 1
        %v1341 = vsel %vm535, %v1339, %v1340
        %v1342 = vrot.slane %v1207, 1
        %v1343 = vrot.slane %v1224, 1
        %v1344 = vsel %vm535, %v1342, %v1343
        %v1345 = vrot.slane %v1210, 1
        %v1346 = vrot.slane %v1225, 1
        %v1347 = vsel %vm535, %v1345, %v1346
        %v1348 = vrot.slane %v1213, 1
        %v1349 = vrot.slane %v1226, 1
        %v1350 = vsel %vm535, %v1348, %v1349
        %v1351 = vrot.slane %v1216, 1
        %v1352 = vrot.slane %v1227, 1
        %v1353 = vsel %vm535, %v1351, %v1352
        %v1354 = vrot.slane %v1219, 1
        %v1355 = vrot.slane %v1228, 1
        %v1356 = vsel %vm535, %v1354, %v1355
        %v1365 = vrot.slane %v1229, 1
        %v1366 = vrot.slane %v1231, 2
        %v1367 = vor.u32 %v1365, %v1366
        %v1368 = vshrl.u32 %v1221, 16
        %v1370 = vrot.slane %v1368, 1
        %v1371 = vrot.slane %v1235, 2
        %v1372 = vor.u32 %v1370, %v1371
        %v1373 = vsel %vm560, %v1367, %v1372
        %v1374 = vrot.slane %v1239, 1
        %v1375 = vrot.slane %v1241, 2
        %v1376 = vor.u32 %v1374, %v1375
        %v1377 = vshrl.u32 %v1222, 16
        %v1379 = vrot.slane %v1377, 1
        %v1380 = vrot.slane %v1245, 2
        %v1381 = vor.u32 %v1379, %v1380
        %v1382 = vsel %vm560, %v1376, %v1381
        %v1383 = vrot.slane %v1249, 1
        %v1384 = vrot.slane %v1251, 2
        %v1385 = vor.u32 %v1383, %v1384
        %v1386 = vshrl.u32 %v1223, 16
        %v1388 = vrot.slane %v1386, 1
        %v1389 = vrot.slane %v1255, 2
        %v1390 = vor.u32 %v1388, %v1389
        %v1391 = vsel %vm560, %v1385, %v1390
        %v1392 = vrot.slane %v1259, 1
        %v1393 = vrot.slane %v1261, 2
        %v1394 = vor.u32 %v1392, %v1393
        %v1395 = vshrl.u32 %v1224, 16
        %v1397 = vrot.slane %v1395, 1
        %v1398 = vrot.slane %v1265, 2
        %v1399 = vor.u32 %v1397, %v1398
        %v1400 = vsel %vm560, %v1394, %v1399
        %v1401 = vrot.slane %v1269, 1
        %v1402 = vrot.slane %v1271, 2
        %v1403 = vor.u32 %v1401, %v1402
        %v1404 = vshrl.u32 %v1225, 16
        %v1406 = vrot.slane %v1404, 1
        %v1407 = vrot.slane %v1275, 2
        %v1408 = vor.u32 %v1406, %v1407
        %v1409 = vsel %vm560, %v1403, %v1408
        %v1410 = vrot.slane %v1279, 1
        %v1411 = vrot.slane %v1281, 2
        %v1412 = vor.u32 %v1410, %v1411
        %v1413 = vshrl.u32 %v1226, 16
        %v1415 = vrot.slane %v1413, 1
        %v1416 = vrot.slane %v1285, 2
        %v1417 = vor.u32 %v1415, %v1416
        %v1418 = vsel %vm560, %v1412, %v1417
        %v1419 = vrot.slane %v1289, 1
        %v1420 = vrot.slane %v1291, 2
        %v1421 = vor.u32 %v1419, %v1420
        %v1422 = vshrl.u32 %v1227, 16
        %v1424 = vrot.slane %v1422, 1
        %v1425 = vrot.slane %v1295, 2
        %v1426 = vor.u32 %v1424, %v1425
        %v1427 = vsel %vm560, %v1421, %v1426
        %v1428 = vrot.slane %v1299, 1
        %v1429 = vrot.slane %v1301, 2
        %v1430 = vor.u32 %v1428, %v1429
        %v1431 = vshrl.u32 %v1228, 16
        %v1433 = vrot.slane %v1431, 1
        %v1434 = vrot.slane %v1305, 2
        %v1435 = vor.u32 %v1433, %v1434
        %v1436 = vsel %vm560, %v1430, %v1435
        %v1445 = vrot.slane %v1198, 2
        %v1446 = vrot.slane %v1221, 2
        %v1447 = vsel %vm649, %v1445, %v1446
        %v1448 = vrot.slane %v1201, 2
        %v1449 = vrot.slane %v1222, 2
        %v1450 = vsel %vm649, %v1448, %v1449
        %v1451 = vrot.slane %v1204, 2
        %v1452 = vrot.slane %v1223, 2
        %v1453 = vsel %vm649, %v1451, %v1452
        %v1454 = vrot.slane %v1207, 2
        %v1455 = vrot.slane %v1224, 2
        %v1456 = vsel %vm649, %v1454, %v1455
        %v1457 = vrot.slane %v1210, 2
        %v1458 = vrot.slane %v1225, 2
        %v1459 = vsel %vm649, %v1457, %v1458
        %v1460 = vrot.slane %v1213, 2
        %v1461 = vrot.slane %v1226, 2
        %v1462 = vsel %vm649, %v1460, %v1461
        %v1463 = vrot.slane %v1216, 2
        %v1464 = vrot.slane %v1227, 2
        %v1465 = vsel %vm649, %v1463, %v1464
        %v1466 = vrot.slane %v1219, 2
        %v1467 = vrot.slane %v1228, 2
        %v1468 = vsel %vm649, %v1466, %v1467
        %v1478 = vlaneseq
        %v1479 = vshrl.u32 %v1478, 7
        %v1480 = vsub.s32 0, %v1479
        %v1481 = vrot.slane %v1180, %v1480
        %v1563 = vunpack.c.l.b16 %v1099
        %v1564 = vunpack.c.l.b16 %v1100
        %v1565 = vunpack.c.l.b16 %v1101
        %v1566 = vunpack.c.l.b16 %v1102
        %v1567 = vunpack.c.l.b16 %v1103
        %v1568 = vunpack.c.l.b16 %v1104
        %v1569 = vunpack.c.l.b16 %v1105
        %v1570 = vunpack.c.l.b16 %v1106
        %v1571 = vunpack.c.l.b16 %v1107
        %v1572 = vunpack.c.l.b16 %v1108
        %v1573 = vunpack.c.l.b16 %v1109
        %v1574 = vunpack.c.l.b16 %v1110
        %v1575 = vunpack.c.l.b16 %v1111
        %v1576 = vunpack.c.l.b16 %v1112
        %v1577 = vunpack.c.l.b16 %v1113
        %v1578 = vunpack.c.l.b16 %v1114
        %v1579 = vunpack.c.l.b16 %v1115
        %v1580 = vunpack.c.l.b16 %v1116
        %v1581 = vunpack.c.l.b16 %v1117
        %v1582 = vunpack.c.l.b16 %v1118
        %v1583 = vunpack.c.l.b16 %v1119
        %v1584 = vunpack.c.l.b16 %v1120
        %v1585 = vunpack.c.l.b16 %v1121
        %v1586 = vunpack.c.l.b16 %v1122
        %v1587 = vunpack.c.l.b16 %v1123
        %v1588 = vunpack.c.l.b16 %v1124
        %v1589 = vunpack.c.l.b16 %v1125
        %v1590 = vunpack.c.l.b16 %v1126
        %v1591 = vunpack.c.l.b16 %v1127
        %v1592 = vunpack.c.l.b16 %v1128
        %v1593 = vunpack.c.l.b16 %v1129
        %v1594 = vunpack.c.l.b16 %v1130
        %v1595 = vunpack.c.l.b16 %v1131
        %v1596 = vunpack.c.l.b16 %v1132
        %v1597 = vunpack.c.l.b16 %v1133
        %v1598 = vunpack.c.l.b16 %v1134
        %v1599 = vunpack.c.l.b16 %v1135
        %v1600 = vunpack.c.l.b16 %v1136
        %v1601 = vunpack.c.l.b16 %v1137
        %v1602 = vunpack.c.l.b16 %v1138
        %v1603 = vunpack.c.l.b16 %v1139
        %v1604 = vunpack.c.l.b16 %v1140
        %v1605 = vunpack.c.l.b16 %v1141
        %v1606 = vunpack.c.l.b16 %v1142
        %v1607 = vunpack.c.l.b16 %v1143
        %v1608 = vunpack.c.l.b16 %v1144
        %v1609 = vunpack.c.l.b16 %v1145
        %v1610 = vunpack.c.l.b16 %v1146
        %v1611 = vunpack.c.l.b16 %v1147
        %v1612 = vunpack.c.l.b16 %v1148
        %v1613 = vunpack.c.l.b16 %v1149
        %v1614 = vunpack.c.l.b16 %v1150
        %v1615 = vunpack.c.l.b16 %v1151
        %v1616 = vunpack.c.l.b16 %v1152
        %v1617 = vunpack.c.l.b16 %v1153
        %v1618 = vunpack.c.l.b16 %v1154
        %v1619 = vunpack.c.l.b16 %v1155
        %v1620 = vunpack.c.l.b16 %v1156
        %v1621 = vunpack.c.l.b16 %v1157
        %v1622 = vunpack.c.l.b16 %v1158
        %v1623 = vunpack.c.l.b16 %v1159
        %v1624 = vunpack.c.l.b16 %v1160
        %v1625 = vunpack.c.l.b16 %v1161
        %v1626 = vunpack.c.l.b16 %v1162
        %v1627 = vunpack.c.l.b16 %v1163
        %v1628 = vunpack.c.l.b16 %v1164
        %v1629 = vunpack.c.l.b16 %v1165
        %v1630 = vunpack.c.l.b16 %v1166
        %v1631 = vunpack.c.l.b16 %v1167
        %v1632 = vunpack.c.l.b16 %v1168
        %v1633 = vunpack.c.l.b16 %v1169
        %v1634 = vunpack.c.l.b16 %v1170
        %v1635 = vunpack.c.l.b16 %v1171
        %v1636 = vunpack.c.l.b16 %v1172
        %v1637 = vunpack.c.l.b16 %v1173
        %v1638 = vunpack.c.l.b16 %v1174
        %v1639 = vunpack.c.l.b16 %v1175
        %v1640 = vunpack.c.l.b16 %v1176
        %v1641 = vunpack.c.l.b16 %v1177
        %v1642 = vunpack.c.l.b16 %v1178
        %v1643 = vpack.c.b16 %v1564, %v1563
        %v1644 = vpack.c.b16 %v1566, %v1565
        %v1645 = vpack.c.b16 %v1568, %v1567
        %v1646 = vpack.c.b16 %v1570, %v1569
        %v1647 = vpack.c.b16 %v1572, %v1571
        %v1648 = vpack.c.b16 %v1574, %v1573
        %v1649 = vpack.c.b16 %v1576, %v1575
        %v1650 = vpack.c.b16 %v1578, %v1577
        %v1651 = vpack.c.b16 %v1580, %v1579
        %v1652 = vpack.c.b16 %v1582, %v1581
        %v1653 = vpack.c.b16 %v1584, %v1583
        %v1654 = vpack.c.b16 %v1586, %v1585
        %v1655 = vpack.c.b16 %v1588, %v1587
        %v1656 = vpack.c.b16 %v1590, %v1589
        %v1657 = vpack.c.b16 %v1592, %v1591
        %v1658 = vpack.c.b16 %v1594, %v1593
        %v1659 = vpack.c.b16 %v1596, %v1595
        %v1660 = vpack.c.b16 %v1598, %v1597
        %v1661 = vpack.c.b16 %v1600, %v1599
        %v1662 = vpack.c.b16 %v1602, %v1601
        %v1663 = vpack.c.b16 %v1604, %v1603
        %v1664 = vpack.c.b16 %v1606, %v1605
        %v1665 = vpack.c.b16 %v1608, %v1607
        %v1666 = vpack.c.b16 %v1610, %v1609
        %v1667 = vpack.c.b16 %v1612, %v1611
        %v1668 = vpack.c.b16 %v1614, %v1613
        %v1669 = vpack.c.b16 %v1616, %v1615
        %v1670 = vpack.c.b16 %v1618, %v1617
        %v1671 = vpack.c.b16 %v1620, %v1619
        %v1672 = vpack.c.b16 %v1622, %v1621
        %v1673 = vpack.c.b16 %v1624, %v1623
        %v1674 = vpack.c.b16 %v1626, %v1625
        %v1675 = vpack.c.b16 %v1628, %v1627
        %v1676 = vpack.c.b16 %v1630, %v1629
        %v1677 = vpack.c.b16 %v1632, %v1631
        %v1678 = vpack.c.b16 %v1634, %v1633
        %v1679 = vpack.c.b16 %v1636, %v1635
        %v1680 = vpack.c.b16 %v1638, %v1637
        %v1681 = vpack.c.b16 %v1640, %v1639
        %v1682 = vpack.c.b16 %v1642, %v1641
        %1723 = vmatprep.subr.bf16.mxu0 0
        %1724 = vmatpush1.bf16.msra.mxu0 %v1650
        %1725 = vmatprep.subr.bf16.mxu0 0
        %1726 = vmatpush1.bf16.msra.mxu0 %v1649
        %1727 = vmatprep.subr.bf16.mxu0 0
        %1728 = vmatpush1.bf16.msra.mxu0 %v1648
        %1729 = vmatprep.subr.bf16.mxu0 0
        %1730 = vmatpush1.bf16.msra.mxu0 %v1647
        %1731 = vmatprep.subr.bf16.mxu0 0
        %1732 = vmatpush1.bf16.msra.mxu0 %v1646
        %1733 = vmatprep.subr.bf16.mxu0 0
        %1734 = vmatpush1.bf16.msra.mxu0 %v1645
        %1735 = vmatprep.subr.bf16.mxu0 0
        %1736 = vmatpush1.bf16.msra.mxu0 %v1644
        %1737 = vmatprep.subr.bf16.mxu0 0
        %1738 = vmatpush1.bf16.msra.mxu0 %v1643
        %1739 = vmatprep.subr.bf16.mxu0 0
        %1740 = vmatpush2.bf16.msra.mxu0 %v1658
        %1741 = vmatprep.subr.bf16.mxu0 0
        %1742 = vmatpush2.bf16.msra.mxu0 %v1657
        %1743 = vmatprep.subr.bf16.mxu0 0
        %1744 = vmatpush2.bf16.msra.mxu0 %v1656
        %1745 = vmatprep.subr.bf16.mxu0 0
        %1746 = vmatpush2.bf16.msra.mxu0 %v1655
        %1747 = vmatprep.subr.bf16.mxu0 0
        %1748 = vmatpush2.bf16.msra.mxu0 %v1654
        %1749 = vmatprep.subr.bf16.mxu0 0
        %1750 = vmatpush2.bf16.msra.mxu0 %v1653
        %1751 = vmatprep.subr.bf16.mxu0 0
        %1752 = vmatpush2.bf16.msra.mxu0 %v1652
        %1753 = vmatprep.subr.bf16.mxu0 0
        %1754 = vmatpush2.bf16.msra.mxu0 %v1651
        %1755 = vmatprep.mubr.bf16.mxu0 %v1238
        %1756 = vmatmul.mubr.bf16.gmra.mxu0 %v1198
        %v1757 = vpop.f32.mrf.mxu0
        %v1758 = vadd.f32 %v1481, %v1757
        %v1759 = vpop.f32.mrf.mxu0
        %v1760 = vpop.f32.mrf.mxu0
        %v1761 = vadd.f32 %v1481, %v1760
        %v1762 = vpop.f32.mrf.mxu0
        %1763 = vmatprep.mubr.bf16.mxu0 %v1248
        %1764 = vmatmul.mubr.bf16.gmra.mxu0 %v1201
        %v1765 = vpop.f32.mrf.mxu0
        %v1766 = vadd.f32 %v1481, %v1765
        %v1767 = vpop.f32.mrf.mxu0
        %v1768 = vpop.f32.mrf.mxu0
        %v1769 = vadd.f32 %v1481, %v1768
        %v1770 = vpop.f32.mrf.mxu0
        %1771 = vmatprep.mubr.bf16.mxu0 %v1258
        %1772 = vmatmul.mubr.bf16.gmra.mxu0 %v1204
        %v1773 = vpop.f32.mrf.mxu0
        %v1774 = vadd.f32 %v1481, %v1773
        %v1775 = vpop.f32.mrf.mxu0
        %v1776 = vpop.f32.mrf.mxu0
        %v1777 = vadd.f32 %v1481, %v1776
        %v1778 = vpop.f32.mrf.mxu0
        %1779 = vmatprep.mubr.bf16.mxu0 %v1268
        %1780 = vmatmul.mubr.bf16.gmra.mxu0 %v1207
        %v1781 = vpop.f32.mrf.mxu0
        %v1782 = vadd.f32 %v1481, %v1781
        %v1783 = vpop.f32.mrf.mxu0
        %v1784 = vpop.f32.mrf.mxu0
        %v1785 = vadd.f32 %v1481, %v1784
        %v1786 = vpop.f32.mrf.mxu0
        %1787 = vmatprep.mubr.bf16.mxu0 %v1278
        %1788 = vmatmul.mubr.bf16.gmra.mxu0 %v1210
        %v1789 = vpop.f32.mrf.mxu0
        %v1790 = vadd.f32 %v1481, %v1789
        %v1791 = vpop.f32.mrf.mxu0
        %v1792 = vpop.f32.mrf.mxu0
        %v1793 = vadd.f32 %v1481, %v1792
        %v1794 = vpop.f32.mrf.mxu0
        %1795 = vmatprep.mubr.bf16.mxu0 %v1288
        %1796 = vmatmul.mubr.bf16.gmra.mxu0 %v1213
        %v1797 = vpop.f32.mrf.mxu0
        %v1798 = vadd.f32 %v1481, %v1797
        %v1799 = vpop.f32.mrf.mxu0
        %v1800 = vpop.f32.mrf.mxu0
        %v1801 = vadd.f32 %v1481, %v1800
        %v1802 = vpop.f32.mrf.mxu0
        %1803 = vmatprep.mubr.bf16.mxu0 %v1298
        %1804 = vmatmul.mubr.bf16.gmra.mxu0 %v1216
        %v1805 = vpop.f32.mrf.mxu0
        %v1806 = vadd.f32 %v1481, %v1805
        %v1807 = vpop.f32.mrf.mxu0
        %v1808 = vpop.f32.mrf.mxu0
        %v1809 = vadd.f32 %v1481, %v1808
        %v1810 = vpop.f32.mrf.mxu0
        %1811 = vmatprep.mubr.bf16.mxu0 %v1308
        %1812 = vmatmul.mubr.bf16.gmra.mxu0 %v1219
        %v1813 = vpop.f32.mrf.mxu0
        %v1814 = vadd.f32 %v1481, %v1813
        %v1815 = vpop.f32.mrf.mxu0
        %v1816 = vpop.f32.mrf.mxu0
        %v1817 = vadd.f32 %v1481, %v1816
        %v1818 = vpop.f32.mrf.mxu0
        %1819 = vdwg.mxu0
        %1820 = vmatprep.subr.bf16.mxu0 0
        %1821 = vmatpush1.bf16.msra.mxu0 %v1666
        %1822 = vmatprep.subr.bf16.mxu0 0
        %1823 = vmatpush1.bf16.msra.mxu0 %v1665
        %1824 = vmatprep.subr.bf16.mxu0 0
        %1825 = vmatpush1.bf16.msra.mxu0 %v1664
        %1826 = vmatprep.subr.bf16.mxu0 0
        %1827 = vmatpush1.bf16.msra.mxu0 %v1663
        %1828 = vmatprep.subr.bf16.mxu0 0
        %1829 = vmatpush1.bf16.msra.mxu0 %v1662
        %1830 = vmatprep.subr.bf16.mxu0 0
        %1831 = vmatpush1.bf16.msra.mxu0 %v1661
        %1832 = vmatprep.subr.bf16.mxu0 0
        %1833 = vmatpush1.bf16.msra.mxu0 %v1660
        %1834 = vmatprep.subr.bf16.mxu0 0
        %1835 = vmatpush1.bf16.msra.mxu0 %v1659
        %1836 = vmatprep.subr.bf16.mxu0 0
        %1837 = vmatpush2.bf16.msra.mxu0 %v1674
        %1838 = vmatprep.subr.bf16.mxu0 0
        %1839 = vmatpush2.bf16.msra.mxu0 %v1673
        %1840 = vmatprep.subr.bf16.mxu0 0
        %1841 = vmatpush2.bf16.msra.mxu0 %v1672
        %1842 = vmatprep.subr.bf16.mxu0 0
        %1843 = vmatpush2.bf16.msra.mxu0 %v1671
        %1844 = vmatprep.subr.bf16.mxu0 0
        %1845 = vmatpush2.bf16.msra.mxu0 %v1670
        %1846 = vmatprep.subr.bf16.mxu0 0
        %1847 = vmatpush2.bf16.msra.mxu0 %v1669
        %1848 = vmatprep.subr.bf16.mxu0 0
        %1849 = vmatpush2.bf16.msra.mxu0 %v1668
        %1850 = vmatprep.subr.bf16.mxu0 0
        %1851 = vmatpush2.bf16.msra.mxu0 %v1667
        %1852 = vmatprep.mubr.bf16.mxu0 %v1373
        %1853 = vmatmul.mubr.bf16.gmra.mxu0 %v1335
        %v1854 = vpop.f32.mrf.mxu0
        %v1855 = vadd.f32 %v1758, %v1854
        %v1856 = vpop.f32.mrf.mxu0
        %v1857 = vpop.f32.mrf.mxu0
        %v1858 = vadd.f32 %v1761, %v1857
        %v1859 = vpop.f32.mrf.mxu0
        %1860 = vmatprep.mubr.bf16.mxu0 %v1382
        %1861 = vmatmul.mubr.bf16.gmra.mxu0 %v1338
        %v1862 = vpop.f32.mrf.mxu0
        %v1863 = vadd.f32 %v1766, %v1862
        %v1864 = vpop.f32.mrf.mxu0
        %v1865 = vpop.f32.mrf.mxu0
        %v1866 = vadd.f32 %v1769, %v1865
        %v1867 = vpop.f32.mrf.mxu0
        %1868 = vmatprep.mubr.bf16.mxu0 %v1391
        %1869 = vmatmul.mubr.bf16.gmra.mxu0 %v1341
        %v1870 = vpop.f32.mrf.mxu0
        %v1871 = vadd.f32 %v1774, %v1870
        %v1872 = vpop.f32.mrf.mxu0
        %v1873 = vpop.f32.mrf.mxu0
        %v1874 = vadd.f32 %v1777, %v1873
        %v1875 = vpop.f32.mrf.mxu0
        %1876 = vmatprep.mubr.bf16.mxu0 %v1400
        %1877 = vmatmul.mubr.bf16.gmra.mxu0 %v1344
        %v1878 = vpop.f32.mrf.mxu0
        %v1879 = vadd.f32 %v1782, %v1878
        %v1880 = vpop.f32.mrf.mxu0
        %v1881 = vpop.f32.mrf.mxu0
        %v1882 = vadd.f32 %v1785, %v1881
        %v1883 = vpop.f32.mrf.mxu0
        %1884 = vmatprep.mubr.bf16.mxu0 %v1409
        %1885 = vmatmul.mubr.bf16.gmra.mxu0 %v1347
        %v1886 = vpop.f32.mrf.mxu0
        %v1887 = vadd.f32 %v1790, %v1886
        %v1888 = vpop.f32.mrf.mxu0
        %v1889 = vpop.f32.mrf.mxu0
        %v1890 = vadd.f32 %v1793, %v1889
        %v1891 = vpop.f32.mrf.mxu0
        %1892 = vmatprep.mubr.bf16.mxu0 %v1418
        %1893 = vmatmul.mubr.bf16.gmra.mxu0 %v1350
        %v1894 = vpop.f32.mrf.mxu0
        %v1895 = vadd.f32 %v1798, %v1894
        %v1896 = vpop.f32.mrf.mxu0
        %v1897 = vpop.f32.mrf.mxu0
        %v1898 = vadd.f32 %v1801, %v1897
        %v1899 = vpop.f32.mrf.mxu0
        %1900 = vmatprep.mubr.bf16.mxu0 %v1427
        %1901 = vmatmul.mubr.bf16.gmra.mxu0 %v1353
        %v1902 = vpop.f32.mrf.mxu0
        %v1903 = vadd.f32 %v1806, %v1902
        %v1904 = vpop.f32.mrf.mxu0
        %v1905 = vpop.f32.mrf.mxu0
        %v1906 = vadd.f32 %v1809, %v1905
        %v1907 = vpop.f32.mrf.mxu0
        %1908 = vmatprep.mubr.bf16.mxu0 %v1436
        %1909 = vmatmul.mubr.bf16.gmra.mxu0 %v1356
        %v1910 = vpop.f32.mrf.mxu0
        %v1911 = vadd.f32 %v1814, %v1910
        %v1912 = vpop.f32.mrf.mxu0
        %v1913 = vpop.f32.mrf.mxu0
        %v1914 = vadd.f32 %v1817, %v1913
        %v1915 = vpop.f32.mrf.mxu0
        %1916 = vdwg.mxu0
        %1917 = vmatprep.subr.bf16.mxu0 0
        %1918 = vmatpush1.bf16.msra.mxu0 %v1682
        %1919 = vmatprep.subr.bf16.mxu0 0
        %1920 = vmatpush1.bf16.msra.mxu0 %v1681
        %1921 = vmatprep.subr.bf16.mxu0 0
        %1922 = vmatpush1.bf16.msra.mxu0 %v1680
        %1923 = vmatprep.subr.bf16.mxu0 0
        %1924 = vmatpush1.bf16.msra.mxu0 %v1679
        %1925 = vmatprep.subr.bf16.mxu0 0
        %1926 = vmatpush1.bf16.msra.mxu0 %v1678
        %1927 = vmatprep.subr.bf16.mxu0 0
        %1928 = vmatpush1.bf16.msra.mxu0 %v1677
        %1929 = vmatprep.subr.bf16.mxu0 0
        %1930 = vmatpush1.bf16.msra.mxu0 %v1676
        %1931 = vmatprep.subr.bf16.mxu0 0
        %1932 = vmatpush1.bf16.msra.mxu0 %v1675
        %1933 = vmatprep.subr.bf16.mxu0 0
        %1934 = vmatpush2.bf16.msra.mxu0 0
        %1935 = vmatprep.subr.bf16.mxu0 0
        %1936 = vmatpush2.bf16.msra.mxu0 0
        %1937 = vmatprep.subr.bf16.mxu0 0
        %1938 = vmatpush2.bf16.msra.mxu0 0
        %1939 = vmatprep.subr.bf16.mxu0 0
        %1940 = vmatpush2.bf16.msra.mxu0 0
        %1941 = vmatprep.subr.bf16.mxu0 0
        %1942 = vmatpush2.bf16.msra.mxu0 0
        %1943 = vmatprep.subr.bf16.mxu0 0
        %1944 = vmatpush2.bf16.msra.mxu0 0
        %1945 = vmatprep.subr.bf16.mxu0 0
        %1946 = vmatpush2.bf16.msra.mxu0 0
        %1947 = vmatprep.subr.bf16.mxu0 0
        %1948 = vmatpush2.bf16.msra.mxu0 0
        %1949 = vmatprep.mubr.bf16.mxu0 0
        %1950 = vmatmul.mubr.bf16.gmra.mxu0 %v1447
        %v1951 = vpop.f32.mrf.mxu0
        %v1952 = vadd.f32 %v1855, %v1951
        %v1953 = vpop.f32.mrf.mxu0
        %v1954 = vpop.f32.mrf.mxu0
        %v1955 = vadd.f32 %v1858, %v1954
        %v1956 = vpop.f32.mrf.mxu0
        %1957 = vmatprep.mubr.bf16.mxu0 0
        %1958 = vmatmul.mubr.bf16.gmra.mxu0 %v1450
        %v1959 = vpop.f32.mrf.mxu0
        %v1960 = vadd.f32 %v1863, %v1959
        %v1961 = vpop.f32.mrf.mxu0
        %v1962 = vpop.f32.mrf.mxu0
        %v1963 = vadd.f32 %v1866, %v1962
        %v1964 = vpop.f32.mrf.mxu0
        %1965 = vmatprep.mubr.bf16.mxu0 0
        %1966 = vmatmul.mubr.bf16.gmra.mxu0 %v1453
        %v1967 = vpop.f32.mrf.mxu0
        %v1968 = vadd.f32 %v1871, %v1967
        %v1969 = vpop.f32.mrf.mxu0
        %v1970 = vpop.f32.mrf.mxu0
        %v1971 = vadd.f32 %v1874, %v1970
        %v1972 = vpop.f32.mrf.mxu0
        %1973 = vmatprep.mubr.bf16.mxu0 0
        %1974 = vmatmul.mubr.bf16.gmra.mxu0 %v1456
        %v1975 = vpop.f32.mrf.mxu0
        %v1976 = vadd.f32 %v1879, %v1975
        %v1977 = vpop.f32.mrf.mxu0
        %v1978 = vpop.f32.mrf.mxu0
        %v1979 = vadd.f32 %v1882, %v1978
        %v1980 = vpop.f32.mrf.mxu0
        %1981 = vmatprep.mubr.bf16.mxu0 0
        %1982 = vmatmul.mubr.bf16.gmra.mxu0 %v1459
        %v1983 = vpop.f32.mrf.mxu0
        %v1984 = vadd.f32 %v1887, %v1983
        %v1985 = vpop.f32.mrf.mxu0
        %v1986 = vpop.f32.mrf.mxu0
        %v1987 = vadd.f32 %v1890, %v1986
        %v1988 = vpop.f32.mrf.mxu0
        %1989 = vmatprep.mubr.bf16.mxu0 0
        %1990 = vmatmul.mubr.bf16.gmra.mxu0 %v1462
        %v1991 = vpop.f32.mrf.mxu0
        %v1992 = vadd.f32 %v1895, %v1991
        %v1993 = vpop.f32.mrf.mxu0
        %v1994 = vpop.f32.mrf.mxu0
        %v1995 = vadd.f32 %v1898, %v1994
        %v1996 = vpop.f32.mrf.mxu0
        %1997 = vmatprep.mubr.bf16.mxu0 0
        %1998 = vmatmul.mubr.bf16.gmra.mxu0 %v1465
        %v1999 = vpop.f32.mrf.mxu0
        %v2000 = vadd.f32 %v1903, %v1999
        %v2001 = vpop.f32.mrf.mxu0
        %v2002 = vpop.f32.mrf.mxu0
        %v2003 = vadd.f32 %v1906, %v2002
        %v2004 = vpop.f32.mrf.mxu0
        %2005 = vmatprep.mubr.bf16.mxu0 0
        %2006 = vmatmul.mubr.bf16.gmra.mxu0 %v1468
        %v2007 = vpop.f32.mrf.mxu0
        %v2008 = vadd.f32 %v1911, %v2007
        %v2009 = vpop.f32.mrf.mxu0
        %v2010 = vpop.f32.mrf.mxu0
        %v2011 = vadd.f32 %v1914, %v2010
        %v2012 = vpop.f32.mrf.mxu0
        %2013 = vdwg.mxu0
        %v2014 = vmax.f32 %v1952, 0.0
        %v2015 = vmax.f32 %v1955, 0.0
        %v2016 = vmax.f32 %v1960, 0.0
        %v2017 = vmax.f32 %v1963, 0.0
        %v2018 = vmax.f32 %v1968, 0.0
        %v2019 = vmax.f32 %v1971, 0.0
        %v2020 = vmax.f32 %v1976, 0.0
        %v2021 = vmax.f32 %v1979, 0.0
        %v2022 = vmax.f32 %v1984, 0.0
        %v2023 = vmax.f32 %v1987, 0.0
        %v2024 = vmax.f32 %v1992, 0.0
        %v2025 = vmax.f32 %v1995, 0.0
        %v2026 = vmax.f32 %v2000, 0.0
        %v2027 = vmax.f32 %v2003, 0.0
        %v2028 = vmax.f32 %v2008, 0.0
        %v2029 = vmax.f32 %v2011, 0.0
        %v2030 = vpack.c.bf16 %v2015, %v2014
        %v2031 = vpack.c.bf16 %v2017, %v2016
        %v2032 = vpack.c.bf16 %v2019, %v2018
        %v2033 = vpack.c.bf16 %v2021, %v2020
        %v2034 = vpack.c.bf16 %v2023, %v2022
        %v2035 = vpack.c.bf16 %v2025, %v2024
        %v2036 = vpack.c.bf16 %v2027, %v2026
        %v2037 = vpack.c.bf16 %v2029, %v2028
        %v2038 = vld [vmem:[#allocation8] sm:$0xf]
        %v2039 = vld [vmem:[#allocation8 + $0x4] sm:$0xf]
        %v2040 = vld [vmem:[#allocation8 + $0x8] sm:$0xf]
        %v2041 = vld [vmem:[#allocation8 + $0xc] sm:$0xf]
        %v2042 = vld [vmem:[#allocation8 + $0x10] sm:$0xf]
        %v2043 = vld [vmem:[#allocation8 + $0x14] sm:$0xf]
        %v2044 = vld [vmem:[#allocation8 + $0x18] sm:$0xf]
        %v2045 = vld [vmem:[#allocation8 + $0x1c] sm:$0xf]
        %v2046 = vld [vmem:[#allocation8 + $0x20] sm:$0xf]
        %v2047 = vld [vmem:[#allocation8 + $0x24] sm:$0xf]
        %v2048 = vld [vmem:[#allocation8 + $0x28] sm:$0xf]
        %v2049 = vld [vmem:[#allocation8 + $0x2c] sm:$0xf]
        %v2050 = vld [vmem:[#allocation8 + $0x30] sm:$0xf]
        %v2051 = vld [vmem:[#allocation8 + $0x34] sm:$0xf]
        %v2052 = vld [vmem:[#allocation8 + $0x38] sm:$0xf]
        %v2053 = vld [vmem:[#allocation8 + $0x3c] sm:$0xf]
        %v2054 = vld [vmem:[#allocation8 + $0x40] sm:$0xf]
        %v2055 = vld [vmem:[#allocation8 + $0x44] sm:$0xf]
        %v2056 = vld [vmem:[#allocation8 + $0x48] sm:$0xf]
        %v2057 = vld [vmem:[#allocation8 + $0x4c] sm:$0xf]
        %v2058 = vld [vmem:[#allocation8 + $0x50] sm:$0xf]
        %v2059 = vld [vmem:[#allocation8 + $0x54] sm:$0xf]
        %v2060 = vld [vmem:[#allocation8 + $0x58] sm:$0xf]
        %v2061 = vld [vmem:[#allocation8 + $0x5c] sm:$0xf]
        %v2062 = vld [vmem:[#allocation8 + $0x60] sm:$0xf]
        %v2063 = vld [vmem:[#allocation8 + $0x64] sm:$0xf]
        %v2064 = vld [vmem:[#allocation8 + $0x68] sm:$0xf]
        %v2065 = vld [vmem:[#allocation8 + $0x6c] sm:$0xf]
        %v2066 = vld [vmem:[#allocation8 + $0x70] sm:$0xf]
        %v2067 = vld [vmem:[#allocation8 + $0x74] sm:$0xf]
        %v2068 = vld [vmem:[#allocation8 + $0x78] sm:$0xf]
        %v2069 = vld [vmem:[#allocation8 + $0x7c] sm:$0xf]
        %v2070 = vld [vmem:[#allocation8 + $0x80] sm:$0xf]
        %v2071 = vld [vmem:[#allocation8 + $0x84] sm:$0xf]
        %v2072 = vld [vmem:[#allocation8 + $0x88] sm:$0xf]
        %v2073 = vld [vmem:[#allocation8 + $0x8c] sm:$0xf]
        %v2074 = vld [vmem:[#allocation8 + $0x90] sm:$0xf]
        %v2075 = vld [vmem:[#allocation8 + $0x94] sm:$0xf]
        %v2076 = vld [vmem:[#allocation8 + $0x98] sm:$0xf]
        %v2077 = vld [vmem:[#allocation8 + $0x9c] sm:$0xf]
        %v2078 = vld [vmem:[#allocation8 + $0xa0] sm:$0xf]
        %v2079 = vld [vmem:[#allocation8 + $0xa4] sm:$0xf]
        %v2080 = vld [vmem:[#allocation8 + $0xa8] sm:$0xf]
        %v2081 = vld [vmem:[#allocation8 + $0xac] sm:$0xf]
        %v2082 = vld [vmem:[#allocation8 + $0xb0] sm:$0xf]
        %v2083 = vld [vmem:[#allocation8 + $0xb4] sm:$0xf]
        %v2084 = vld [vmem:[#allocation8 + $0xb8] sm:$0xf]
        %v2085 = vld [vmem:[#allocation8 + $0xbc] sm:$0xf]
        %v2086 = vld [vmem:[#allocation8 + $0xc0] sm:$0xf]
        %v2087 = vld [vmem:[#allocation8 + $0xc4] sm:$0xf]
        %v2088 = vld [vmem:[#allocation8 + $0xc8] sm:$0xf]
        %v2089 = vld [vmem:[#allocation8 + $0xcc] sm:$0xf]
        %v2090 = vld [vmem:[#allocation8 + $0xd0] sm:$0xf]
        %v2091 = vld [vmem:[#allocation8 + $0xd4] sm:$0xf]
        %v2092 = vld [vmem:[#allocation8 + $0xd8] sm:$0xf]
        %v2093 = vld [vmem:[#allocation8 + $0xdc] sm:$0xf]
        %v2094 = vld [vmem:[#allocation8 + $0xe0] sm:$0xf]
        %v2095 = vld [vmem:[#allocation8 + $0xe4] sm:$0xf]
        %v2096 = vld [vmem:[#allocation8 + $0xe8] sm:$0xf]
        %v2097 = vld [vmem:[#allocation8 + $0xec] sm:$0xf]
        %v2098 = vld [vmem:[#allocation8 + $0xf0] sm:$0xf]
        %v2099 = vld [vmem:[#allocation8 + $0xf4] sm:$0xf]
        %v2100 = vld [vmem:[#allocation8 + $0xf8] sm:$0xf]
        %v2101 = vld [vmem:[#allocation8 + $0xfc] sm:$0xf]
        %v2102 = vld [vmem:[#allocation8 + $0x100] sm:$0xf]
        %v2103 = vld [vmem:[#allocation8 + $0x104] sm:$0xf]
        %v2104 = vld [vmem:[#allocation8 + $0x108] sm:$0xf]
        %v2105 = vld [vmem:[#allocation8 + $0x10c] sm:$0xf]
        %v2106 = vld [vmem:[#allocation8 + $0x110] sm:$0xf]
        %v2107 = vld [vmem:[#allocation8 + $0x114] sm:$0xf]
        %v2108 = vld [vmem:[#allocation8 + $0x118] sm:$0xf]
        %v2109 = vld [vmem:[#allocation8 + $0x11c] sm:$0xf]
        %v2110 = vld [vmem:[#allocation8 + $0x120] sm:$0xf]
        %v2111 = vld [vmem:[#allocation8 + $0x124] sm:$0xf]
        %v2112 = vld [vmem:[#allocation8 + $0x128] sm:$0xf]
        %v2113 = vld [vmem:[#allocation8 + $0x12c] sm:$0xf]
        %v2114 = vld [vmem:[#allocation8 + $0x130] sm:$0xf]
        %v2115 = vld [vmem:[#allocation8 + $0x134] sm:$0xf]
        %v2116 = vld [vmem:[#allocation8 + $0x138] sm:$0xf]
        %v2117 = vld [vmem:[#allocation8 + $0x13c] sm:$0xf]
        %s2118 = scalar_lea.vmem %s4, 2
        %v2119 = vld [vmem:[%s2118] sm:$0x1]
        %v2128 = vrot.slane %v2030, 7
        %v2129 = vrot.slane %v2031, 7
        %v2130 = vrot.slane %v2032, 7
        %v2131 = vrot.slane %v2033, 7
        %v2132 = vrot.slane %v2034, 7
        %v2133 = vrot.slane %v2035, 7
        %v2134 = vrot.slane %v2036, 7
        %v2135 = vrot.slane %v2037, 7
        %v2137 = vsel %vm396, 0, %v2128
        %v2140 = vsel %vm396, 0, %v2129
        %v2143 = vsel %vm396, 0, %v2130
        %v2146 = vsel %vm396, 0, %v2131
        %v2149 = vsel %vm396, 0, %v2132
        %v2152 = vsel %vm396, 0, %v2133
        %v2155 = vsel %vm396, 0, %v2134
        %v2158 = vsel %vm396, 0, %v2135
        %v2160 = vsel %vm396, %v2128, 0
        %v2161 = vsel %vm396, %v2129, 0
        %v2162 = vsel %vm396, %v2130, 0
        %v2163 = vsel %vm396, %v2131, 0
        %v2164 = vsel %vm396, %v2132, 0
        %v2165 = vsel %vm396, %v2133, 0
        %v2166 = vsel %vm396, %v2134, 0
        %v2167 = vsel %vm396, %v2135, 0
        %v2168 = vshrl.u32 %v2137, 16
        %v2170 = vshll.u32 %v2137, 16
        %v2172 = vrot.slane %v2170, 1
        %v2173 = vor.u32 %v2168, %v2172
        %v2174 = vshll.u32 %v2160, 16
        %v2176 = vrot.slane %v2174, 1
        %v2177 = vsel %vm422, %v2173, %v2176
        %v2178 = vshrl.u32 %v2140, 16
        %v2180 = vshll.u32 %v2140, 16
        %v2182 = vrot.slane %v2180, 1
        %v2183 = vor.u32 %v2178, %v2182
        %v2184 = vshll.u32 %v2161, 16
        %v2186 = vrot.slane %v2184, 1
        %v2187 = vsel %vm422, %v2183, %v2186
        %v2188 = vshrl.u32 %v2143, 16
        %v2190 = vshll.u32 %v2143, 16
        %v2192 = vrot.slane %v2190, 1
        %v2193 = vor.u32 %v2188, %v2192
        %v2194 = vshll.u32 %v2162, 16
        %v2196 = vrot.slane %v2194, 1
        %v2197 = vsel %vm422, %v2193, %v2196
        %v2198 = vshrl.u32 %v2146, 16
        %v2200 = vshll.u32 %v2146, 16
        %v2202 = vrot.slane %v2200, 1
        %v2203 = vor.u32 %v2198, %v2202
        %v2204 = vshll.u32 %v2163, 16
        %v2206 = vrot.slane %v2204, 1
        %v2207 = vsel %vm422, %v2203, %v2206
        %v2208 = vshrl.u32 %v2149, 16
        %v2210 = vshll.u32 %v2149, 16
        %v2212 = vrot.slane %v2210, 1
        %v2213 = vor.u32 %v2208, %v2212
        %v2214 = vshll.u32 %v2164, 16
        %v2216 = vrot.slane %v2214, 1
        %v2217 = vsel %vm422, %v2213, %v2216
        %v2218 = vshrl.u32 %v2152, 16
        %v2220 = vshll.u32 %v2152, 16
        %v2222 = vrot.slane %v2220, 1
        %v2223 = vor.u32 %v2218, %v2222
        %v2224 = vshll.u32 %v2165, 16
        %v2226 = vrot.slane %v2224, 1
        %v2227 = vsel %vm422, %v2223, %v2226
        %v2228 = vshrl.u32 %v2155, 16
        %v2230 = vshll.u32 %v2155, 16
        %v2232 = vrot.slane %v2230, 1
        %v2233 = vor.u32 %v2228, %v2232
        %v2234 = vshll.u32 %v2166, 16
        %v2236 = vrot.slane %v2234, 1
        %v2237 = vsel %vm422, %v2233, %v2236
        %v2238 = vshrl.u32 %v2158, 16
        %v2240 = vshll.u32 %v2158, 16
        %v2242 = vrot.slane %v2240, 1
        %v2243 = vor.u32 %v2238, %v2242
        %v2244 = vshll.u32 %v2167, 16
        %v2246 = vrot.slane %v2244, 1
        %v2247 = vsel %vm422, %v2243, %v2246
        %v2272 = vrot.slane %v2137, 1
        %v2273 = vrot.slane %v2160, 1
        %v2274 = vsel %vm535, %v2272, %v2273
        %v2275 = vrot.slane %v2140, 1
        %v2276 = vrot.slane %v2161, 1
        %v2277 = vsel %vm535, %v2275, %v2276
        %v2278 = vrot.slane %v2143, 1
        %v2279 = vrot.slane %v2162, 1
        %v2280 = vsel %vm535, %v2278, %v2279
        %v2281 = vrot.slane %v2146, 1
        %v2282 = vrot.slane %v2163, 1
        %v2283 = vsel %vm535, %v2281, %v2282
        %v2284 = vrot.slane %v2149, 1
        %v2285 = vrot.slane %v2164, 1
        %v2286 = vsel %vm535, %v2284, %v2285
        %v2287 = vrot.slane %v2152, 1
        %v2288 = vrot.slane %v2165, 1
        %v2289 = vsel %vm535, %v2287, %v2288
        %v2290 = vrot.slane %v2155, 1
        %v2291 = vrot.slane %v2166, 1
        %v2292 = vsel %vm535, %v2290, %v2291
        %v2293 = vrot.slane %v2158, 1
        %v2294 = vrot.slane %v2167, 1
        %v2295 = vsel %vm535, %v2293, %v2294
        %v2304 = vrot.slane %v2168, 1
        %v2305 = vrot.slane %v2170, 2
        %v2306 = vor.u32 %v2304, %v2305
        %v2307 = vshrl.u32 %v2160, 16
        %v2309 = vrot.slane %v2307, 1
        %v2310 = vrot.slane %v2174, 2
        %v2311 = vor.u32 %v2309, %v2310
        %v2312 = vsel %vm560, %v2306, %v2311
        %v2313 = vrot.slane %v2178, 1
        %v2314 = vrot.slane %v2180, 2
        %v2315 = vor.u32 %v2313, %v2314
        %v2316 = vshrl.u32 %v2161, 16
        %v2318 = vrot.slane %v2316, 1
        %v2319 = vrot.slane %v2184, 2
        %v2320 = vor.u32 %v2318, %v2319
        %v2321 = vsel %vm560, %v2315, %v2320
        %v2322 = vrot.slane %v2188, 1
        %v2323 = vrot.slane %v2190, 2
        %v2324 = vor.u32 %v2322, %v2323
        %v2325 = vshrl.u32 %v2162, 16
        %v2327 = vrot.slane %v2325, 1
        %v2328 = vrot.slane %v2194, 2
        %v2329 = vor.u32 %v2327, %v2328
        %v2330 = vsel %vm560, %v2324, %v2329
        %v2331 = vrot.slane %v2198, 1
        %v2332 = vrot.slane %v2200, 2
        %v2333 = vor.u32 %v2331, %v2332
        %v2334 = vshrl.u32 %v2163, 16
        %v2336 = vrot.slane %v2334, 1
        %v2337 = vrot.slane %v2204, 2
        %v2338 = vor.u32 %v2336, %v2337
        %v2339 = vsel %vm560, %v2333, %v2338
        %v2340 = vrot.slane %v2208, 1
        %v2341 = vrot.slane %v2210, 2
        %v2342 = vor.u32 %v2340, %v2341
        %v2343 = vshrl.u32 %v2164, 16
        %v2345 = vrot.slane %v2343, 1
        %v2346 = vrot.slane %v2214, 2
        %v2347 = vor.u32 %v2345, %v2346
        %v2348 = vsel %vm560, %v2342, %v2347
        %v2349 = vrot.slane %v2218, 1
        %v2350 = vrot.slane %v2220, 2
        %v2351 = vor.u32 %v2349, %v2350
        %v2352 = vshrl.u32 %v2165, 16
        %v2354 = vrot.slane %v2352, 1
        %v2355 = vrot.slane %v2224, 2
        %v2356 = vor.u32 %v2354, %v2355
        %v2357 = vsel %vm560, %v2351, %v2356
        %v2358 = vrot.slane %v2228, 1
        %v2359 = vrot.slane %v2230, 2
        %v2360 = vor.u32 %v2358, %v2359
        %v2361 = vshrl.u32 %v2166, 16
        %v2363 = vrot.slane %v2361, 1
        %v2364 = vrot.slane %v2234, 2
        %v2365 = vor.u32 %v2363, %v2364
        %v2366 = vsel %vm560, %v2360, %v2365
        %v2367 = vrot.slane %v2238, 1
        %v2368 = vrot.slane %v2240, 2
        %v2369 = vor.u32 %v2367, %v2368
        %v2370 = vshrl.u32 %v2167, 16
        %v2372 = vrot.slane %v2370, 1
        %v2373 = vrot.slane %v2244, 2
        %v2374 = vor.u32 %v2372, %v2373
        %v2375 = vsel %vm560, %v2369, %v2374
        %v2384 = vrot.slane %v2137, 2
        %v2385 = vrot.slane %v2160, 2
        %v2386 = vsel %vm649, %v2384, %v2385
        %v2387 = vrot.slane %v2140, 2
        %v2388 = vrot.slane %v2161, 2
        %v2389 = vsel %vm649, %v2387, %v2388
        %v2390 = vrot.slane %v2143, 2
        %v2391 = vrot.slane %v2162, 2
        %v2392 = vsel %vm649, %v2390, %v2391
        %v2393 = vrot.slane %v2146, 2
        %v2394 = vrot.slane %v2163, 2
        %v2395 = vsel %vm649, %v2393, %v2394
        %v2396 = vrot.slane %v2149, 2
        %v2397 = vrot.slane %v2164, 2
        %v2398 = vsel %vm649, %v2396, %v2397
        %v2399 = vrot.slane %v2152, 2
        %v2400 = vrot.slane %v2165, 2
        %v2401 = vsel %vm649, %v2399, %v2400
        %v2402 = vrot.slane %v2155, 2
        %v2403 = vrot.slane %v2166, 2
        %v2404 = vsel %vm649, %v2402, %v2403
        %v2405 = vrot.slane %v2158, 2
        %v2406 = vrot.slane %v2167, 2
        %v2407 = vsel %vm649, %v2405, %v2406
        %v2417 = vlaneseq
        %v2418 = vshrl.u32 %v2417, 7
        %v2419 = vsub.s32 0, %v2418
        %v2420 = vrot.slane %v2119, %v2419
        %v2502 = vunpack.c.l.b16 %v2038
        %v2503 = vunpack.c.l.b16 %v2039
        %v2504 = vunpack.c.l.b16 %v2040
        %v2505 = vunpack.c.l.b16 %v2041
        %v2506 = vunpack.c.l.b16 %v2042
        %v2507 = vunpack.c.l.b16 %v2043
        %v2508 = vunpack.c.l.b16 %v2044
        %v2509 = vunpack.c.l.b16 %v2045
        %v2510 = vunpack.c.l.b16 %v2046
        %v2511 = vunpack.c.l.b16 %v2047
        %v2512 = vunpack.c.l.b16 %v2048
        %v2513 = vunpack.c.l.b16 %v2049
        %v2514 = vunpack.c.l.b16 %v2050
        %v2515 = vunpack.c.l.b16 %v2051
        %v2516 = vunpack.c.l.b16 %v2052
        %v2517 = vunpack.c.l.b16 %v2053
        %v2518 = vunpack.c.l.b16 %v2054
        %v2519 = vunpack.c.l.b16 %v2055
        %v2520 = vunpack.c.l.b16 %v2056
        %v2521 = vunpack.c.l.b16 %v2057
        %v2522 = vunpack.c.l.b16 %v2058
        %v2523 = vunpack.c.l.b16 %v2059
        %v2524 = vunpack.c.l.b16 %v2060
        %v2525 = vunpack.c.l.b16 %v2061
        %v2526 = vunpack.c.l.b16 %v2062
        %v2527 = vunpack.c.l.b16 %v2063
        %v2528 = vunpack.c.l.b16 %v2064
        %v2529 = vunpack.c.l.b16 %v2065
        %v2530 = vunpack.c.l.b16 %v2066
        %v2531 = vunpack.c.l.b16 %v2067
        %v2532 = vunpack.c.l.b16 %v2068
        %v2533 = vunpack.c.l.b16 %v2069
        %v2534 = vunpack.c.l.b16 %v2070
        %v2535 = vunpack.c.l.b16 %v2071
        %v2536 = vunpack.c.l.b16 %v2072
        %v2537 = vunpack.c.l.b16 %v2073
        %v2538 = vunpack.c.l.b16 %v2074
        %v2539 = vunpack.c.l.b16 %v2075
        %v2540 = vunpack.c.l.b16 %v2076
        %v2541 = vunpack.c.l.b16 %v2077
        %v2542 = vunpack.c.l.b16 %v2078
        %v2543 = vunpack.c.l.b16 %v2079
        %v2544 = vunpack.c.l.b16 %v2080
        %v2545 = vunpack.c.l.b16 %v2081
        %v2546 = vunpack.c.l.b16 %v2082
        %v2547 = vunpack.c.l.b16 %v2083
        %v2548 = vunpack.c.l.b16 %v2084
        %v2549 = vunpack.c.l.b16 %v2085
        %v2550 = vunpack.c.l.b16 %v2086
        %v2551 = vunpack.c.l.b16 %v2087
        %v2552 = vunpack.c.l.b16 %v2088
        %v2553 = vunpack.c.l.b16 %v2089
        %v2554 = vunpack.c.l.b16 %v2090
        %v2555 = vunpack.c.l.b16 %v2091
        %v2556 = vunpack.c.l.b16 %v2092
        %v2557 = vunpack.c.l.b16 %v2093
        %v2558 = vunpack.c.l.b16 %v2094
        %v2559 = vunpack.c.l.b16 %v2095
        %v2560 = vunpack.c.l.b16 %v2096
        %v2561 = vunpack.c.l.b16 %v2097
        %v2562 = vunpack.c.l.b16 %v2098
        %v2563 = vunpack.c.l.b16 %v2099
        %v2564 = vunpack.c.l.b16 %v2100
        %v2565 = vunpack.c.l.b16 %v2101
        %v2566 = vunpack.c.l.b16 %v2102
        %v2567 = vunpack.c.l.b16 %v2103
        %v2568 = vunpack.c.l.b16 %v2104
        %v2569 = vunpack.c.l.b16 %v2105
        %v2570 = vunpack.c.l.b16 %v2106
        %v2571 = vunpack.c.l.b16 %v2107
        %v2572 = vunpack.c.l.b16 %v2108
        %v2573 = vunpack.c.l.b16 %v2109
        %v2574 = vunpack.c.l.b16 %v2110
        %v2575 = vunpack.c.l.b16 %v2111
        %v2576 = vunpack.c.l.b16 %v2112
        %v2577 = vunpack.c.l.b16 %v2113
        %v2578 = vunpack.c.l.b16 %v2114
        %v2579 = vunpack.c.l.b16 %v2115
        %v2580 = vunpack.c.l.b16 %v2116
        %v2581 = vunpack.c.l.b16 %v2117
        %v2582 = vpack.c.b16 %v2503, %v2502
        %v2583 = vpack.c.b16 %v2505, %v2504
        %v2584 = vpack.c.b16 %v2507, %v2506
        %v2585 = vpack.c.b16 %v2509, %v2508
        %v2586 = vpack.c.b16 %v2511, %v2510
        %v2587 = vpack.c.b16 %v2513, %v2512
        %v2588 = vpack.c.b16 %v2515, %v2514
        %v2589 = vpack.c.b16 %v2517, %v2516
        %v2590 = vpack.c.b16 %v2519, %v2518
        %v2591 = vpack.c.b16 %v2521, %v2520
        %v2592 = vpack.c.b16 %v2523, %v2522
        %v2593 = vpack.c.b16 %v2525, %v2524
        %v2594 = vpack.c.b16 %v2527, %v2526
        %v2595 = vpack.c.b16 %v2529, %v2528
        %v2596 = vpack.c.b16 %v2531, %v2530
        %v2597 = vpack.c.b16 %v2533, %v2532
        %v2598 = vpack.c.b16 %v2535, %v2534
        %v2599 = vpack.c.b16 %v2537, %v2536
        %v2600 = vpack.c.b16 %v2539, %v2538
        %v2601 = vpack.c.b16 %v2541, %v2540
        %v2602 = vpack.c.b16 %v2543, %v2542
        %v2603 = vpack.c.b16 %v2545, %v2544
        %v2604 = vpack.c.b16 %v2547, %v2546
        %v2605 = vpack.c.b16 %v2549, %v2548
        %v2606 = vpack.c.b16 %v2551, %v2550
        %v2607 = vpack.c.b16 %v2553, %v2552
        %v2608 = vpack.c.b16 %v2555, %v2554
        %v2609 = vpack.c.b16 %v2557, %v2556
        %v2610 = vpack.c.b16 %v2559, %v2558
        %v2611 = vpack.c.b16 %v2561, %v2560
        %v2612 = vpack.c.b16 %v2563, %v2562
        %v2613 = vpack.c.b16 %v2565, %v2564
        %v2614 = vpack.c.b16 %v2567, %v2566
        %v2615 = vpack.c.b16 %v2569, %v2568
        %v2616 = vpack.c.b16 %v2571, %v2570
        %v2617 = vpack.c.b16 %v2573, %v2572
        %v2618 = vpack.c.b16 %v2575, %v2574
        %v2619 = vpack.c.b16 %v2577, %v2576
        %v2620 = vpack.c.b16 %v2579, %v2578
        %v2621 = vpack.c.b16 %v2581, %v2580
        %2662 = vmatprep.subr.bf16.mxu0 0
        %2663 = vmatpush1.bf16.msra.mxu0 %v2589
        %2664 = vmatprep.subr.bf16.mxu0 0
        %2665 = vmatpush1.bf16.msra.mxu0 %v2588
        %2666 = vmatprep.subr.bf16.mxu0 0
        %2667 = vmatpush1.bf16.msra.mxu0 %v2587
        %2668 = vmatprep.subr.bf16.mxu0 0
        %2669 = vmatpush1.bf16.msra.mxu0 %v2586
        %2670 = vmatprep.subr.bf16.mxu0 0
        %2671 = vmatpush1.bf16.msra.mxu0 %v2585
        %2672 = vmatprep.subr.bf16.mxu0 0
        %2673 = vmatpush1.bf16.msra.mxu0 %v2584
        %2674 = vmatprep.subr.bf16.mxu0 0
        %2675 = vmatpush1.bf16.msra.mxu0 %v2583
        %2676 = vmatprep.subr.bf16.mxu0 0
        %2677 = vmatpush1.bf16.msra.mxu0 %v2582
        %2678 = vmatprep.subr.bf16.mxu0 0
        %2679 = vmatpush2.bf16.msra.mxu0 %v2597
        %2680 = vmatprep.subr.bf16.mxu0 0
        %2681 = vmatpush2.bf16.msra.mxu0 %v2596
        %2682 = vmatprep.subr.bf16.mxu0 0
        %2683 = vmatpush2.bf16.msra.mxu0 %v2595
        %2684 = vmatprep.subr.bf16.mxu0 0
        %2685 = vmatpush2.bf16.msra.mxu0 %v2594
        %2686 = vmatprep.subr.bf16.mxu0 0
        %2687 = vmatpush2.bf16.msra.mxu0 %v2593
        %2688 = vmatprep.subr.bf16.mxu0 0
        %2689 = vmatpush2.bf16.msra.mxu0 %v2592
        %2690 = vmatprep.subr.bf16.mxu0 0
        %2691 = vmatpush2.bf16.msra.mxu0 %v2591
        %2692 = vmatprep.subr.bf16.mxu0 0
        %2693 = vmatpush2.bf16.msra.mxu0 %v2590
        %2694 = vmatprep.mubr.bf16.mxu0 %v2177
        %2695 = vmatmul.mubr.bf16.gmra.mxu0 %v2137
        %v2696 = vpop.f32.mrf.mxu0
        %v2697 = vadd.f32 %v2420, %v2696
        %v2698 = vpop.f32.mrf.mxu0
        %v2699 = vpop.f32.mrf.mxu0
        %v2700 = vadd.f32 %v2420, %v2699
        %v2701 = vpop.f32.mrf.mxu0
        %2702 = vmatprep.mubr.bf16.mxu0 %v2187
        %2703 = vmatmul.mubr.bf16.gmra.mxu0 %v2140
        %v2704 = vpop.f32.mrf.mxu0
        %v2705 = vadd.f32 %v2420, %v2704
        %v2706 = vpop.f32.mrf.mxu0
        %v2707 = vpop.f32.mrf.mxu0
        %v2708 = vadd.f32 %v2420, %v2707
        %v2709 = vpop.f32.mrf.mxu0
        %2710 = vmatprep.mubr.bf16.mxu0 %v2197
        %2711 = vmatmul.mubr.bf16.gmra.mxu0 %v2143
        %v2712 = vpop.f32.mrf.mxu0
        %v2713 = vadd.f32 %v2420, %v2712
        %v2714 = vpop.f32.mrf.mxu0
        %v2715 = vpop.f32.mrf.mxu0
        %v2716 = vadd.f32 %v2420, %v2715
        %v2717 = vpop.f32.mrf.mxu0
        %2718 = vmatprep.mubr.bf16.mxu0 %v2207
        %2719 = vmatmul.mubr.bf16.gmra.mxu0 %v2146
        %v2720 = vpop.f32.mrf.mxu0
        %v2721 = vadd.f32 %v2420, %v2720
        %v2722 = vpop.f32.mrf.mxu0
        %v2723 = vpop.f32.mrf.mxu0
        %v2724 = vadd.f32 %v2420, %v2723
        %v2725 = vpop.f32.mrf.mxu0
        %2726 = vmatprep.mubr.bf16.mxu0 %v2217
        %2727 = vmatmul.mubr.bf16.gmra.mxu0 %v2149
        %v2728 = vpop.f32.mrf.mxu0
        %v2729 = vadd.f32 %v2420, %v2728
        %v2730 = vpop.f32.mrf.mxu0
        %v2731 = vpop.f32.mrf.mxu0
        %v2732 = vadd.f32 %v2420, %v2731
        %v2733 = vpop.f32.mrf.mxu0
        %2734 = vmatprep.mubr.bf16.mxu0 %v2227
        %2735 = vmatmul.mubr.bf16.gmra.mxu0 %v2152
        %v2736 = vpop.f32.mrf.mxu0
        %v2737 = vadd.f32 %v2420, %v2736
        %v2738 = vpop.f32.mrf.mxu0
        %v2739 = vpop.f32.mrf.mxu0
        %v2740 = vadd.f32 %v2420, %v2739
        %v2741 = vpop.f32.mrf.mxu0
        %2742 = vmatprep.mubr.bf16.mxu0 %v2237
        %2743 = vmatmul.mubr.bf16.gmra.mxu0 %v2155
        %v2744 = vpop.f32.mrf.mxu0
        %v2745 = vadd.f32 %v2420, %v2744
        %v2746 = vpop.f32.mrf.mxu0
        %v2747 = vpop.f32.mrf.mxu0
        %v2748 = vadd.f32 %v2420, %v2747
        %v2749 = vpop.f32.mrf.mxu0
        %2750 = vmatprep.mubr.bf16.mxu0 %v2247
        %2751 = vmatmul.mubr.bf16.gmra.mxu0 %v2158
        %v2752 = vpop.f32.mrf.mxu0
        %v2753 = vadd.f32 %v2420, %v2752
        %v2754 = vpop.f32.mrf.mxu0
        %v2755 = vpop.f32.mrf.mxu0
        %v2756 = vadd.f32 %v2420, %v2755
        %v2757 = vpop.f32.mrf.mxu0
        %2758 = vdwg.mxu0
        %2759 = vmatprep.subr.bf16.mxu0 0
        %2760 = vmatpush1.bf16.msra.mxu0 %v2605
        %2761 = vmatprep.subr.bf16.mxu0 0
        %2762 = vmatpush1.bf16.msra.mxu0 %v2604
        %2763 = vmatprep.subr.bf16.mxu0 0
        %2764 = vmatpush1.bf16.msra.mxu0 %v2603
        %2765 = vmatprep.subr.bf16.mxu0 0
        %2766 = vmatpush1.bf16.msra.mxu0 %v2602
        %2767 = vmatprep.subr.bf16.mxu0 0
        %2768 = vmatpush1.bf16.msra.mxu0 %v2601
        %2769 = vmatprep.subr.bf16.mxu0 0
        %2770 = vmatpush1.bf16.msra.mxu0 %v2600
        %2771 = vmatprep.subr.bf16.mxu0 0
        %2772 = vmatpush1.bf16.msra.mxu0 %v2599
        %2773 = vmatprep.subr.bf16.mxu0 0
        %2774 = vmatpush1.bf16.msra.mxu0 %v2598
        %2775 = vmatprep.subr.bf16.mxu0 0
        %2776 = vmatpush2.bf16.msra.mxu0 %v2613
        %2777 = vmatprep.subr.bf16.mxu0 0
        %2778 = vmatpush2.bf16.msra.mxu0 %v2612
        %2779 = vmatprep.subr.bf16.mxu0 0
        %2780 = vmatpush2.bf16.msra.mxu0 %v2611
        %2781 = vmatprep.subr.bf16.mxu0 0
        %2782 = vmatpush2.bf16.msra.mxu0 %v2610
        %2783 = vmatprep.subr.bf16.mxu0 0
        %2784 = vmatpush2.bf16.msra.mxu0 %v2609
        %2785 = vmatprep.subr.bf16.mxu0 0
        %2786 = vmatpush2.bf16.msra.mxu0 %v2608
        %2787 = vmatprep.subr.bf16.mxu0 0
        %2788 = vmatpush2.bf16.msra.mxu0 %v2607
        %2789 = vmatprep.subr.bf16.mxu0 0
        %2790 = vmatpush2.bf16.msra.mxu0 %v2606
        %2791 = vmatprep.mubr.bf16.mxu0 %v2312
        %2792 = vmatmul.mubr.bf16.gmra.mxu0 %v2274
        %v2793 = vpop.f32.mrf.mxu0
        %v2794 = vadd.f32 %v2697, %v2793
        %v2795 = vpop.f32.mrf.mxu0
        %v2796 = vpop.f32.mrf.mxu0
        %v2797 = vadd.f32 %v2700, %v2796
        %v2798 = vpop.f32.mrf.mxu0
        %2799 = vmatprep.mubr.bf16.mxu0 %v2321
        %2800 = vmatmul.mubr.bf16.gmra.mxu0 %v2277
        %v2801 = vpop.f32.mrf.mxu0
        %v2802 = vadd.f32 %v2705, %v2801
        %v2803 = vpop.f32.mrf.mxu0
        %v2804 = vpop.f32.mrf.mxu0
        %v2805 = vadd.f32 %v2708, %v2804
        %v2806 = vpop.f32.mrf.mxu0
        %2807 = vmatprep.mubr.bf16.mxu0 %v2330
        %2808 = vmatmul.mubr.bf16.gmra.mxu0 %v2280
        %v2809 = vpop.f32.mrf.mxu0
        %v2810 = vadd.f32 %v2713, %v2809
        %v2811 = vpop.f32.mrf.mxu0
        %v2812 = vpop.f32.mrf.mxu0
        %v2813 = vadd.f32 %v2716, %v2812
        %v2814 = vpop.f32.mrf.mxu0
        %2815 = vmatprep.mubr.bf16.mxu0 %v2339
        %2816 = vmatmul.mubr.bf16.gmra.mxu0 %v2283
        %v2817 = vpop.f32.mrf.mxu0
        %v2818 = vadd.f32 %v2721, %v2817
        %v2819 = vpop.f32.mrf.mxu0
        %v2820 = vpop.f32.mrf.mxu0
        %v2821 = vadd.f32 %v2724, %v2820
        %v2822 = vpop.f32.mrf.mxu0
        %2823 = vmatprep.mubr.bf16.mxu0 %v2348
        %2824 = vmatmul.mubr.bf16.gmra.mxu0 %v2286
        %v2825 = vpop.f32.mrf.mxu0
        %v2826 = vadd.f32 %v2729, %v2825
        %v2827 = vpop.f32.mrf.mxu0
        %v2828 = vpop.f32.mrf.mxu0
        %v2829 = vadd.f32 %v2732, %v2828
        %v2830 = vpop.f32.mrf.mxu0
        %2831 = vmatprep.mubr.bf16.mxu0 %v2357
        %2832 = vmatmul.mubr.bf16.gmra.mxu0 %v2289
        %v2833 = vpop.f32.mrf.mxu0
        %v2834 = vadd.f32 %v2737, %v2833
        %v2835 = vpop.f32.mrf.mxu0
        %v2836 = vpop.f32.mrf.mxu0
        %v2837 = vadd.f32 %v2740, %v2836
        %v2838 = vpop.f32.mrf.mxu0
        %2839 = vmatprep.mubr.bf16.mxu0 %v2366
        %2840 = vmatmul.mubr.bf16.gmra.mxu0 %v2292
        %v2841 = vpop.f32.mrf.mxu0
        %v2842 = vadd.f32 %v2745, %v2841
        %v2843 = vpop.f32.mrf.mxu0
        %v2844 = vpop.f32.mrf.mxu0
        %v2845 = vadd.f32 %v2748, %v2844
        %v2846 = vpop.f32.mrf.mxu0
        %2847 = vmatprep.mubr.bf16.mxu0 %v2375
        %2848 = vmatmul.mubr.bf16.gmra.mxu0 %v2295
        %v2849 = vpop.f32.mrf.mxu0
        %v2850 = vadd.f32 %v2753, %v2849
        %v2851 = vpop.f32.mrf.mxu0
        %v2852 = vpop.f32.mrf.mxu0
        %v2853 = vadd.f32 %v2756, %v2852
        %v2854 = vpop.f32.mrf.mxu0
        %2855 = vdwg.mxu0
        %2856 = vmatprep.subr.bf16.mxu0 0
        %2857 = vmatpush1.bf16.msra.mxu0 %v2621
        %2858 = vmatprep.subr.bf16.mxu0 0
        %2859 = vmatpush1.bf16.msra.mxu0 %v2620
        %2860 = vmatprep.subr.bf16.mxu0 0
        %2861 = vmatpush1.bf16.msra.mxu0 %v2619
        %2862 = vmatprep.subr.bf16.mxu0 0
        %2863 = vmatpush1.bf16.msra.mxu0 %v2618
        %2864 = vmatprep.subr.bf16.mxu0 0
        %2865 = vmatpush1.bf16.msra.mxu0 %v2617
        %2866 = vmatprep.subr.bf16.mxu0 0
        %2867 = vmatpush1.bf16.msra.mxu0 %v2616
        %2868 = vmatprep.subr.bf16.mxu0 0
        %2869 = vmatpush1.bf16.msra.mxu0 %v2615
        %2870 = vmatprep.subr.bf16.mxu0 0
        %2871 = vmatpush1.bf16.msra.mxu0 %v2614
        %2872 = vmatprep.subr.bf16.mxu0 0
        %2873 = vmatpush2.bf16.msra.mxu0 0
        %2874 = vmatprep.subr.bf16.mxu0 0
        %2875 = vmatpush2.bf16.msra.mxu0 0
        %2876 = vmatprep.subr.bf16.mxu0 0
        %2877 = vmatpush2.bf16.msra.mxu0 0
        %2878 = vmatprep.subr.bf16.mxu0 0
        %2879 = vmatpush2.bf16.msra.mxu0 0
        %2880 = vmatprep.subr.bf16.mxu0 0
        %2881 = vmatpush2.bf16.msra.mxu0 0
        %2882 = vmatprep.subr.bf16.mxu0 0
        %2883 = vmatpush2.bf16.msra.mxu0 0
        %2884 = vmatprep.subr.bf16.mxu0 0
        %2885 = vmatpush2.bf16.msra.mxu0 0
        %2886 = vmatprep.subr.bf16.mxu0 0
        %2887 = vmatpush2.bf16.msra.mxu0 0
        %2888 = vmatprep.mubr.bf16.mxu0 0
        %2889 = vmatmul.mubr.bf16.gmra.mxu0 %v2386
        %v2890 = vpop.f32.mrf.mxu0
        %v2891 = vadd.f32 %v2794, %v2890
        %v2892 = vpop.f32.mrf.mxu0
        %v2893 = vpop.f32.mrf.mxu0
        %v2894 = vadd.f32 %v2797, %v2893
        %v2895 = vpop.f32.mrf.mxu0
        %2896 = vmatprep.mubr.bf16.mxu0 0
        %2897 = vmatmul.mubr.bf16.gmra.mxu0 %v2389
        %v2898 = vpop.f32.mrf.mxu0
        %v2899 = vadd.f32 %v2802, %v2898
        %v2900 = vpop.f32.mrf.mxu0
        %v2901 = vpop.f32.mrf.mxu0
        %v2902 = vadd.f32 %v2805, %v2901
        %v2903 = vpop.f32.mrf.mxu0
        %2904 = vmatprep.mubr.bf16.mxu0 0
        %2905 = vmatmul.mubr.bf16.gmra.mxu0 %v2392
        %v2906 = vpop.f32.mrf.mxu0
        %v2907 = vadd.f32 %v2810, %v2906
        %v2908 = vpop.f32.mrf.mxu0
        %v2909 = vpop.f32.mrf.mxu0
        %v2910 = vadd.f32 %v2813, %v2909
        %v2911 = vpop.f32.mrf.mxu0
        %2912 = vmatprep.mubr.bf16.mxu0 0
        %2913 = vmatmul.mubr.bf16.gmra.mxu0 %v2395
        %v2914 = vpop.f32.mrf.mxu0
        %v2915 = vadd.f32 %v2818, %v2914
        %v2916 = vpop.f32.mrf.mxu0
        %v2917 = vpop.f32.mrf.mxu0
        %v2918 = vadd.f32 %v2821, %v2917
        %v2919 = vpop.f32.mrf.mxu0
        %2920 = vmatprep.mubr.bf16.mxu0 0
        %2921 = vmatmul.mubr.bf16.gmra.mxu0 %v2398
        %v2922 = vpop.f32.mrf.mxu0
        %v2923 = vadd.f32 %v2826, %v2922
        %v2924 = vpop.f32.mrf.mxu0
        %v2925 = vpop.f32.mrf.mxu0
        %v2926 = vadd.f32 %v2829, %v2925
        %v2927 = vpop.f32.mrf.mxu0
        %2928 = vmatprep.mubr.bf16.mxu0 0
        %2929 = vmatmul.mubr.bf16.gmra.mxu0 %v2401
        %v2930 = vpop.f32.mrf.mxu0
        %v2931 = vadd.f32 %v2834, %v2930
        %v2932 = vpop.f32.mrf.mxu0
        %v2933 = vpop.f32.mrf.mxu0
        %v2934 = vadd.f32 %v2837, %v2933
        %v2935 = vpop.f32.mrf.mxu0
        %2936 = vmatprep.mubr.bf16.mxu0 0
        %2937 = vmatmul.mubr.bf16.gmra.mxu0 %v2404
        %v2938 = vpop.f32.mrf.mxu0
        %v2939 = vadd.f32 %v2842, %v2938
        %v2940 = vpop.f32.mrf.mxu0
        %v2941 = vpop.f32.mrf.mxu0
        %v2942 = vadd.f32 %v2845, %v2941
        %v2943 = vpop.f32.mrf.mxu0
        %2944 = vmatprep.mubr.bf16.mxu0 0
        %2945 = vmatmul.mubr.bf16.gmra.mxu0 %v2407
        %v2946 = vpop.f32.mrf.mxu0
        %v2947 = vadd.f32 %v2850, %v2946
        %v2948 = vpop.f32.mrf.mxu0
        %v2949 = vpop.f32.mrf.mxu0
        %v2950 = vadd.f32 %v2853, %v2949
        %v2951 = vpop.f32.mrf.mxu0
        %2952 = vdwg.mxu0
        %v2953 = vmax.f32 %v2891, 0.0
        %v2954 = vmax.f32 %v2894, 0.0
        %v2955 = vmax.f32 %v2899, 0.0
        %v2956 = vmax.f32 %v2902, 0.0
        %v2957 = vmax.f32 %v2907, 0.0
        %v2958 = vmax.f32 %v2910, 0.0
        %v2959 = vmax.f32 %v2915, 0.0
        %v2960 = vmax.f32 %v2918, 0.0
        %v2961 = vmax.f32 %v2923, 0.0
        %v2962 = vmax.f32 %v2926, 0.0
        %v2963 = vmax.f32 %v2931, 0.0
        %v2964 = vmax.f32 %v2934, 0.0
        %v2965 = vmax.f32 %v2939, 0.0
        %v2966 = vmax.f32 %v2942, 0.0
        %v2967 = vmax.f32 %v2947, 0.0
        %v2968 = vmax.f32 %v2950, 0.0
        %2969 = vst [vmem:[%s287] sm:$0xff] %v2953
        %2970 = vst [vmem:[%s287 + $0x8] sm:$0xff] %v2954
        %2971 = vst [vmem:[%s287 + $0x10] sm:$0xff] %v2955
        %2972 = vst [vmem:[%s287 + $0x18] sm:$0xff] %v2956
        %2973 = vst [vmem:[%s287 + $0x20] sm:$0xff] %v2957
        %2974 = vst [vmem:[%s287 + $0x28] sm:$0xff] %v2958
        %2975 = vst [vmem:[%s287 + $0x30] sm:$0xff] %v2959
        %2976 = vst [vmem:[%s287 + $0x38] sm:$0xff] %v2960
        %2977 = vst [vmem:[%s287 + $0x40] sm:$0xff] %v2961
        %2978 = vst [vmem:[%s287 + $0x48] sm:$0xff] %v2962
        %2979 = vst [vmem:[%s287 + $0x50] sm:$0xff] %v2963
        %2980 = vst [vmem:[%s287 + $0x58] sm:$0xff] %v2964
        %2981 = vst [vmem:[%s287 + $0x60] sm:$0xff] %v2965
        %2982 = vst [vmem:[%s287 + $0x68] sm:$0xff] %v2966
        %2983 = vst [vmem:[%s287 + $0x70] sm:$0xff] %v2967
        %2984 = vst [vmem:[%s287 + $0x78] sm:$0xff] %v2968
        %s2985 = sand.u32 %s142, 1
        %s2986 = scalar_lea.sflag [#allocation4], %s2985
        %s2987 = sand.u32 %s142, 1
        %s2988 = smul.addr %s2987, 128
        %s2989 = scalar_lea.vmem [#allocation10], %s2988
        // Predicated region
        $region57: #{tpu_custom_call.1} parent=39 // pred_check
          %p2990 = pneg %p152
        $region58: #{tpu_custom_call.1} parent=39 // pred_check_branch
          %2992 = sbr.rel (%p2990) target = $region60
        $region59: #{tpu_custom_call.1} parent=39 // pred_region
          %s2993 = smul.u32 8, %s24
          %s2995 = ssub.s32 2048, 2048
          %2996 = vsyncadd %s2986, %s2995
          %s2997 = smul.addr %s2993, 2
          %s2998 = smul.addr %s2997, 128
          %s2999 = scalar_lea.hbm %s5, %s2998
          %s3000 = sshll.u32 %s2989, 4
          %s3001 = int_to_ptr.vmem [resolvable:$true] %s3000
          %3006 = dma.vmem_to_hbm [thread:$0]  %s3001, 2048, %s2999, %s2986, 128, 128, 8
        $region60: #{tpu_custom_call.1} parent=39 // pred_fallthru
          _
      $region40: #{tpu_custom_call.1} parent=5 // pred_fallthru
        _
      %p3007 = scmp.le.s32.totalorder 2, %s19
      // Predicated region
      $region61: #{tpu_custom_call.1} parent=5 // pred_check
        %p3008 = pneg %p3007
      $region62: #{tpu_custom_call.1} parent=5 // pred_check_branch
        %3010 = sbr.rel (%p3008) target = $region64
      $region63: #{tpu_custom_call.1} parent=5 // pred_region
        %s3011 = ssub.s32 %s19, 2
        // Predicated region
        $region65: #{tpu_custom_call.1} parent=63 // pred_check
          %p3012 = pneg %p158
        $region66: #{tpu_custom_call.1} parent=63 // pred_check_branch
          %3014 = sbr.rel (%p3012) target = $region68
        $region67: #{tpu_custom_call.1} parent=63 // pred_region
          %s3015 = sand.u32 %s143, 1
          %s3016 = scalar_lea.sflag [#allocation4], %s3015
          %s3017 = sand.u32 %s143, 1
          %s3018 = smul.addr %s3017, 128
          %s3019 = scalar_lea.vmem [#allocation10], %s3018
          %3020 = dma.done %s3016, 2048
        $region68: #{tpu_custom_call.1} parent=63 // pred_fallthru
          _
      $region64: #{tpu_custom_call.1} parent=5 // pred_fallthru
        _
    $region6: #{tpu_custom_call.1} parent=1 // loop_footer
      %s23 = sadd.s32 1, %s19
    $region7: #{tpu_custom_call.1} parent=1 // loop_footer_branch
      %18 = sbr.rel target = $region3
    $region8: #{tpu_custom_call.1} parent=1 // loop_exit
      _
    %3021 = vsyncpa [#allocation3], 1
    %s3022 = scalar_lea.sflag [#allocation3], 1
    %3023 = vsyncpa %s3022, 1
    %3024 = vsyncpa [#allocation6], 1
    %3025 = vsyncpa [#allocation9], 1
    %3026 = vsyncpa [#allocation4], 1
    %s3027 = scalar_lea.sflag [#allocation4], 1
    %3028 = vsyncpa %s3027, 1

</llo_original>
